<compile_context>
chip_gen: v5e
topology: v5e:2x2
jax: 0.10.0
libtpu: 0.0.40
codegen_flags: <defaults>
</compile_context>

<pallas_src>
import functools

import jax
import jax.numpy as jnp
from jax.experimental import pallas as pl
from jax.experimental.pallas import tpu as pltpu


def _decomp_attention_kernel(
    prem_ref, hypo_ref,
    fw1_ref, fb1_ref, fw2_ref, fb2_ref,             # mlp_F
    gw1x_ref, gw1a_ref, gb1_ref, gw2_ref, gb2_ref,  # mlp_G (first layer pre-split)
    hw1x_ref, hw1a_ref, hb1_ref, hw2_ref, hb2_ref,  # mlp_H (first layer pre-split)
    ow_ref, ob_ref,                                 # linear_final (lane-padded)
    out_ref,                                        # (1, Bt, NLP)
    *, num_labels,
):
    Bt, Lp, D = prem_ref.shape
    _, Lh, _ = hypo_ref.shape
    f32 = jnp.float32

    prem = prem_ref[...]                       # (Bt, Lp, D)  matmul dtype (bf16)
    hypo = hypo_ref[...]                       # (Bt, Lh, D)
    cdt = prem.dtype

    prem2d = prem.reshape(Bt * Lp, D)
    hypo2d = hypo.reshape(Bt * Lh, D)
    prem32 = prem.astype(f32)                  # f32 copies for the VPU attention FMAs
    hypo32 = hypo.astype(f32)

    fw1, fb1, fw2, fb2 = fw1_ref[...], fb1_ref[...], fw2_ref[...], fb2_ref[...]
    gw1x, gw1a, gb1 = gw1x_ref[...], gw1a_ref[...], gb1_ref[...]
    gw2, gb2 = gw2_ref[...], gb2_ref[...]
    hw1x, hw1a, hb1 = hw1x_ref[...], hw1a_ref[...], hb1_ref[...]
    hw2, hb2 = hw2_ref[...], hb2_ref[...]
    ow, ob = ow_ref[...], ob_ref[...]

    def mlp2(x_terms, w1_terms, b1, w2, b2):
        """Two-layer ReLU MLP; layer 1 = sum_k x_k @ w1_k (split-weight 'concat')."""
        acc = b1                               # f32 bias, broadcasts over rows
        for x, w in zip(x_terms, w1_terms):
            acc = acc + jnp.dot(x, w, preferred_element_type=f32)
        h = jnp.maximum(acc, 0.0)              # f32
        y = jnp.dot(h.astype(cdt), w2, preferred_element_type=f32) + b2
        return jnp.maximum(y, 0.0)             # f32

    # ---- Attend ----
    f_prem = mlp2([prem2d], [fw1], fb1, fw2, fb2).astype(cdt).reshape(Bt, Lp, D)
    f_hypo = mlp2([hypo2d], [fw1], fb1, fw2, fb2).astype(cdt).reshape(Bt, Lh, D)

    # Score matrices on the MXU (K = D).  Both orientations are computed directly
    # so both softmaxes are lane-axis reductions and no transposed relayout of the
    # (Bt, Lp, Lh) tensor is needed.
    e_ij = jnp.einsum("bpd,bhd->bph", f_prem, f_hypo,
                      preferred_element_type=f32)        # (Bt, Lp, Lh)
    e_ji = jnp.einsum("bhd,bpd->bhp", f_hypo, f_prem,
                      preferred_element_type=f32)        # (Bt, Lh, Lp)
    # TODO(synk): e_ji is e_ij^T; fold into a single in-kernel minor-dim transpose
    # (pltpu.einshape) once that lowering is verified, halving the per-step count
    # of tiny batched score matmuls.

    def softmax_last(e):
        m = jnp.max(e, axis=-1, keepdims=True)
        p = jnp.exp(e - m)
        # EUP approx reciprocal instead of an exact VALU divide.
        return p * pl.reciprocal(jnp.sum(p, axis=-1, keepdims=True), approx=True)

    beta_w = softmax_last(e_ij)                # (Bt, Lp, Lh) f32
    alpha_w = softmax_last(e_ji)               # (Bt, Lh, Lp) f32

    # Attention-weighted sums as unrolled f32 VPU FMAs: the contraction length
    # (Lh / Lp) is tiny, so a batched MXU matmul would pay full push/drain latency
    # per example.  Kept entirely in f32 (no bf16 cast of the softmax weights).
    beta_i = beta_w[:, :, 0:1] * hypo32[:, 0:1, :]          # (Bt, Lp, D)
    for h in range(1, Lh):
        beta_i = beta_i + beta_w[:, :, h:h + 1] * hypo32[:, h:h + 1, :]
    alpha_j = alpha_w[:, :, 0:1] * prem32[:, 0:1, :]         # (Bt, Lh, D)
    for p in range(1, Lp):
        alpha_j = alpha_j + alpha_w[:, :, p:p + 1] * prem32[:, p:p + 1, :]

    # ---- Compare ----
    # concat([x, att], -1) @ gw1  ==  x @ gw1[:D] + att @ gw1[D:]  (no lane concat);
    # premise / hypothesis branches run separately so there is no axis-0 concat
    # copy either.
    cmp_p = mlp2([prem2d, beta_i.reshape(Bt * Lp, D).astype(cdt)],
                 [gw1x, gw1a], gb1, gw2, gb2)                # (Bt*Lp, D) f32
    cmp_h = mlp2([hypo2d, alpha_j.reshape(Bt * Lh, D).astype(cdt)],
                 [gw1x, gw1a], gb1, gw2, gb2)                # (Bt*Lh, D) f32

    # ---- Aggregate ----
    v1 = jnp.sum(cmp_p.reshape(Bt, Lp, D), axis=1)           # (Bt, D)
    v2 = jnp.sum(cmp_h.reshape(Bt, Lh, D), axis=1)           # (Bt, D)
    y_pred = mlp2([v1.astype(cdt), v2.astype(cdt)],
                  [hw1x, hw1a], hb1, hw2, hb2)               # (Bt, D) f32

    # ---- Final layer: linear + log_softmax on a lane-dense padded block ----
    logits = jnp.dot(y_pred.astype(cdt), ow,
                     preferred_element_type=f32) + ob        # (Bt, NLP)
    col = jax.lax.broadcasted_iota(jnp.int32, logits.shape, 1)
    masked = jnp.where(col < num_labels, logits, jnp.float32(-1e30))
    m = jnp.max(masked, axis=-1, keepdims=True)
    lse = jnp.log(jnp.sum(jnp.exp(masked - m), axis=-1, keepdims=True)) + m
    out_ref[0] = (logits - lse).astype(out_ref.dtype)        # padded cols sliced off


def decomposable_attention(prem_emb, hypo_emb, params, *, block_b=None,
                           matmul_dtype=jnp.bfloat16):
    """prem_emb: (B, Lp, D), hypo_emb: (B, Lh, D) -> log-probs (B, num_labels)."""
    B, Lp, D = prem_emb.shape
    _, Lh, _ = hypo_emb.shape
    num_labels = params["ow"].shape[1]
    NLP = -(-num_labels // 128) * 128          # lane-dense padded label width

    if block_b is None:
        # ~1024 flattened MLP rows per step amortizes the per-step fixed overhead
        # and the weight pipeline slots.
        block_b = max(1, 1024 // max(Lp + Lh, 1))
        # v7x megacore: keep >= 2 grid steps so the "parallel" axis feeds both TCs.
        block_b = min(block_b, max(1, -(-B // 2)))
        # VMEM cap (v7x has only 64 MiB physical): keep the lane-padded f32
        # intermediates under ~24 MiB.
        per_ex = (10 * (Lp + Lh) * max(D, 128) + 3 * (Lp + Lh) * 128) * 4
        block_b = min(block_b, max(1, (24 << 20) // per_ex))
        block_b = min(block_b, B)
    Bt = int(block_b)
    nblk = -(-B // Bt)
    B_pad = nblk * Bt
    if B_pad != B:
        pad = ((0, B_pad - B), (0, 0), (0, 0))
        prem_emb = jnp.pad(prem_emb, pad)
        hypo_emb = jnp.pad(hypo_emb, pad)

    cd = matmul_dtype
    f32 = jnp.float32
    prem_in = prem_emb.astype(cd)
    hypo_in = hypo_emb.astype(cd)

    # Pre-split the 2D-wide first layers of mlp_G / mlp_H so the kernel never does
    # a lane-axis concatenation; zero-pad the final layer to a 128-wide label block.
    gw1, hw1 = params["gw1"], params["hw1"]
    ow_pad = jnp.pad(params["ow"], ((0, 0), (0, NLP - num_labels)))
    ob_pad = jnp.pad(params["ob"], ((0, 0), (0, NLP - num_labels)))
    weights = {
        "fw1": params["fw1"].astype(cd), "fb1": params["fb1"].astype(f32),
        "fw2": params["fw2"].astype(cd), "fb2": params["fb2"].astype(f32),
        "gw1x": gw1[:D].astype(cd), "gw1a": gw1[D:].astype(cd),
        "gb1": params["gb1"].astype(f32),
        "gw2": params["gw2"].astype(cd), "gb2": params["gb2"].astype(f32),
        "hw1x": hw1[:D].astype(cd), "hw1a": hw1[D:].astype(cd),
        "hb1": params["hb1"].astype(f32),
        "hw2": params["hw2"].astype(cd), "hb2": params["hb2"].astype(f32),
        "ow": ow_pad.astype(cd), "ob": ob_pad.astype(f32),
    }
    order = ["fw1", "fb1", "fw2", "fb2",
             "gw1x", "gw1a", "gb1", "gw2", "gb2",
             "hw1x", "hw1a", "hb1", "hw2", "hb2",
             "ow", "ob"]
    weight_args = [weights[k] for k in order]
    # TODO(synk): constant-index weight blocks could be single-buffered
    # (pipeline_mode=pl.Buffered(1)) or DMA'd once via memory_space=pl.ANY;
    # negligible at D=32, revisit for large hidden dims.
    weight_specs = [pl.BlockSpec(weights[k].shape, lambda b: (0, 0)) for k in order]

    grid_spec = pltpu.PrefetchScalarGridSpec(
        num_scalar_prefetch=0,
        grid=(nblk,),
        in_specs=[
            pl.BlockSpec((Bt, Lp, D), lambda b: (b, 0, 0)),
            pl.BlockSpec((Bt, Lh, D), lambda b: (b, 0, 0)),
        ] + weight_specs,
        # 3-D output so the block's last two dims always equal the full array dims
        # (lane-dense 128-wide stores, no masked vst.msk partial stores).
        out_specs=pl.BlockSpec((1, Bt, NLP), lambda b: (b, 0, 0)),
    )

    # Scoped-VMEM limit derived from the actual per-step buffers (fits v7x 64 MiB).
    est = (10 * Bt * (Lp + Lh) * max(D, 128) * 4      # f32 intermediates (lane-padded)
           + 3 * Bt * (Lp + Lh) * 128 * 4             # score / softmax temps
           + 4 * Bt * (Lp + Lh) * D * 2               # double-buffered bf16 inputs
           + 2 * Bt * NLP * 4                         # double-buffered output block
           + 4 * (10 * D * D + D * NLP) * 2           # weights (double-buffered)
           + (4 << 20))                               # slack / spills
    vmem_limit = int(min(48 << 20, max(32 << 20, 2 * est)))

    kernel = functools.partial(_decomp_attention_kernel, num_labels=num_labels)
    out = pl.pallas_call(
        kernel,
        out_shape=jax.ShapeDtypeStruct((nblk, Bt, NLP), jnp.float32),
        grid_spec=grid_spec,
        compiler_params=pltpu.CompilerParams(
            # "parallel" only buys anything on v7x (2 TCs/chip); no-op on v5e/v6e.
            dimension_semantics=("parallel",),
            vmem_limit_bytes=vmem_limit),
    )(prem_in, hypo_in, *weight_args)
    return out.reshape(B_pad, NLP)[:B, :num_labels]


def init_params(key, hidden_dim, num_labels, para_init=0.01):
    """Deterministic normal(0, para_init) init, matching the PyTorch __init__ shapes."""
    ks = iter(jax.random.split(key, 32))

    def lin(in_dim, out_dim):
        w = para_init * jax.random.normal(next(ks), (in_dim, out_dim), jnp.float32)
        b = para_init * jax.random.normal(next(ks), (1, out_dim), jnp.float32)
        return w, b

    D = hidden_dim
    p = {}
    p["fw1"], p["fb1"] = lin(D, D)            # mlp_F layer 1
    p["fw2"], p["fb2"] = lin(D, D)            # mlp_F layer 2
    p["gw1"], p["gb1"] = lin(2 * D, D)        # mlp_G layer 1
    p["gw2"], p["gb2"] = lin(D, D)            # mlp_G layer 2
    p["hw1"], p["hb1"] = lin(2 * D, D)        # mlp_H layer 1
    p["hw2"], p["hb2"] = lin(D, D)            # mlp_H layer 2
    p["ow"], p["ob"] = lin(D, num_labels)     # linear_final
    return p


def _reference(prem, hypo, p):
    """Pure-JAX f32 reference of the same forward (for sanity check)."""
    def two_layer(x, w1, b1, w2, b2):
        h = jnp.maximum(x @ w1 + b1, 0.0)
        return jnp.maximum(h @ w2 + b2, 0.0)

    f_p = two_layer(prem, p["fw1"], p["fb1"], p["fw2"], p["fb2"])
    f_h = two_layer(hypo, p["fw1"], p["fb1"], p["fw2"], p["fb2"])
    e = jnp.einsum("bpd,bhd->bph", f_p, f_h)
    beta = jax.nn.softmax(e, axis=-1) @ hypo
    alpha = jax.nn.softmax(jnp.swapaxes(e, 1, 2), axis=-1) @ prem
    c1 = two_layer(jnp.concatenate([prem, beta], -1),
                   p["gw1"], p["gb1"], p["gw2"], p["gb2"])
    c2 = two_layer(jnp.concatenate([hypo, alpha], -1),
                   p["gw1"], p["gb1"], p["gw2"], p["gb2"])
    v = jnp.concatenate([c1.sum(1), c2.sum(1)], -1)
    y = two_layer(v, p["hw1"], p["hb1"], p["hw2"], p["hb2"])
    logits = y @ p["ow"] + p["ob"]
    return jax.nn.log_softmax(logits, axis=-1)


if __name__ == "__main__":
    hidden_dim = 32
    num_labels = 3
    len_prem = 8
    len_hypo = 8

    key = jax.random.PRNGKey(0)
    k_params, k_prem, k_hypo = jax.random.split(key, 3)
    params = init_params(k_params, hidden_dim, num_labels, para_init=0.01)

    # Config 1: small batch (exercises the >=2-grid-step path, Bt = 1).
    batch = 2
    prem_emb = jax.random.normal(k_prem, (batch, len_prem, hidden_dim), jnp.float32)
    hypo_emb = jax.random.normal(k_hypo, (batch, len_hypo, hidden_dim), jnp.float32)
    out = jax.block_until_ready(decomposable_attention(prem_emb, hypo_emb, params))
    ref = jax.block_until_ready(_reference(prem_emb, hypo_emb, params))
    assert out.shape == (batch, num_labels)
    # bf16 matmul inputs (f32 accumulation) + approx reciprocal -> relaxed tolerance.
    assert jnp.allclose(out, ref, atol=1e-2, rtol=1e-2), "mismatch vs JAX reference"

    # Config 2: batch not divisible by the block size (exercises batch padding).
    batch2 = 5
    prem2 = jax.random.normal(jax.random.PRNGKey(1),
                              (batch2, len_prem, hidden_dim), jnp.float32)
    hypo2 = jax.random.normal(jax.random.PRNGKey(2),
                              (batch2, len_hypo, hidden_dim), jnp.float32)
    out2 = jax.block_until_ready(decomposable_attention(prem2, hypo2, params))
    ref2 = jax.block_until_ready(_reference(prem2, hypo2, params))
    assert out2.shape == (batch2, num_labels)
    assert jnp.allclose(out2, ref2, atol=1e-2, rtol=1e-2), "mismatch (padded batch)"

    print("KERNEL_OK")
</pallas_src>

<mosaic_0001>
module attributes {stable_mosaic.version = 11 : i64} {
  func.func @_decomp_attention_kernel(%arg0: i32, %arg1: memref<1x8x32xbf16, #tpu.memory_space<vmem>>, %arg2: memref<1x8x32xbf16, #tpu.memory_space<vmem>>, %arg3: memref<32x32xbf16, #tpu.memory_space<vmem>>, %arg4: memref<1x32xf32, #tpu.memory_space<vmem>>, %arg5: memref<32x32xbf16, #tpu.memory_space<vmem>>, %arg6: memref<1x32xf32, #tpu.memory_space<vmem>>, %arg7: memref<32x32xbf16, #tpu.memory_space<vmem>>, %arg8: memref<32x32xbf16, #tpu.memory_space<vmem>>, %arg9: memref<1x32xf32, #tpu.memory_space<vmem>>, %arg10: memref<32x32xbf16, #tpu.memory_space<vmem>>, %arg11: memref<1x32xf32, #tpu.memory_space<vmem>>, %arg12: memref<32x32xbf16, #tpu.memory_space<vmem>>, %arg13: memref<32x32xbf16, #tpu.memory_space<vmem>>, %arg14: memref<1x32xf32, #tpu.memory_space<vmem>>, %arg15: memref<32x32xbf16, #tpu.memory_space<vmem>>, %arg16: memref<1x32xf32, #tpu.memory_space<vmem>>, %arg17: memref<32x128xbf16, #tpu.memory_space<vmem>>, %arg18: memref<1x128xf32, #tpu.memory_space<vmem>>, %arg19: memref<1x1x128xf32, #tpu.memory_space<vmem>>) attributes {dimension_semantics = [#tpu.dimension_semantics<parallel>], iteration_bounds = array<i64: 2>, scalar_prefetch = 0 : i64, scratch_operands = 0 : i64, tpu.core_type = #tpu.core_type<tc>, window_params = [{transform_indices = @transform_0, window_bounds = array<i64: 1, 8, 32>}, {transform_indices = @transform_1, window_bounds = array<i64: 1, 8, 32>}, {pipeline_mode = #tpu.pipeline_mode<synchronous>, transform_indices = @transform_2, window_bounds = array<i64: 32, 32>}, {pipeline_mode = #tpu.pipeline_mode<synchronous>, transform_indices = @transform_3, window_bounds = array<i64: 1, 32>}, {pipeline_mode = #tpu.pipeline_mode<synchronous>, transform_indices = @transform_4, window_bounds = array<i64: 32, 32>}, {pipeline_mode = #tpu.pipeline_mode<synchronous>, transform_indices = @transform_5, window_bounds = array<i64: 1, 32>}, {pipeline_mode = #tpu.pipeline_mode<synchronous>, transform_indices = @transform_6, window_bounds = array<i64: 32, 32>}, {pipeline_mode = #tpu.pipeline_mode<synchronous>, transform_indices = @transform_7, window_bounds = array<i64: 32, 32>}, {pipeline_mode = #tpu.pipeline_mode<synchronous>, transform_indices = @transform_8, window_bounds = array<i64: 1, 32>}, {pipeline_mode = #tpu.pipeline_mode<synchronous>, transform_indices = @transform_9, window_bounds = array<i64: 32, 32>}, {pipeline_mode = #tpu.pipeline_mode<synchronous>, transform_indices = @transform_10, window_bounds = array<i64: 1, 32>}, {pipeline_mode = #tpu.pipeline_mode<synchronous>, transform_indices = @transform_11, window_bounds = array<i64: 32, 32>}, {pipeline_mode = #tpu.pipeline_mode<synchronous>, transform_indices = @transform_12, window_bounds = array<i64: 32, 32>}, {pipeline_mode = #tpu.pipeline_mode<synchronous>, transform_indices = @transform_13, window_bounds = array<i64: 1, 32>}, {pipeline_mode = #tpu.pipeline_mode<synchronous>, transform_indices = @transform_14, window_bounds = array<i64: 32, 32>}, {pipeline_mode = #tpu.pipeline_mode<synchronous>, transform_indices = @transform_15, window_bounds = array<i64: 1, 32>}, {pipeline_mode = #tpu.pipeline_mode<synchronous>, transform_indices = @transform_16, window_bounds = array<i64: 32, 128>}, {pipeline_mode = #tpu.pipeline_mode<synchronous>, transform_indices = @transform_17, window_bounds = array<i64: 1, 128>}, {transform_indices = @transform_18, window_bounds = array<i64: 1, 1, 128>}]} {
    %c0 = arith.constant 0 : index
    %c0_0 = arith.constant 0 : index
    %c0_1 = arith.constant 0 : index
    %0 = vector.load %arg1[%c0, %c0_0, %c0_1] : memref<1x8x32xbf16, #tpu.memory_space<vmem>>, vector<1x8x32xbf16>
    %c0_2 = arith.constant 0 : index
    %c0_3 = arith.constant 0 : index
    %c0_4 = arith.constant 0 : index
    %1 = vector.load %arg2[%c0_2, %c0_3, %c0_4] : memref<1x8x32xbf16, #tpu.memory_space<vmem>>, vector<1x8x32xbf16>
    %2 = vector.shape_cast %0 : vector<1x8x32xbf16> to vector<8x32xbf16>
    %3 = vector.shape_cast %1 : vector<1x8x32xbf16> to vector<8x32xbf16>
    %4 = arith.extf %0 : vector<1x8x32xbf16> to vector<1x8x32xf32>
    %5 = arith.extf %1 : vector<1x8x32xbf16> to vector<1x8x32xf32>
    %c0_5 = arith.constant 0 : index
    %c0_6 = arith.constant 0 : index
    %6 = vector.load %arg3[%c0_5, %c0_6] : memref<32x32xbf16, #tpu.memory_space<vmem>>, vector<32x32xbf16>
    %c0_7 = arith.constant 0 : index
    %c0_8 = arith.constant 0 : index
    %7 = vector.load %arg4[%c0_7, %c0_8] : memref<1x32xf32, #tpu.memory_space<vmem>>, vector<1x32xf32>
    %c0_9 = arith.constant 0 : index
    %c0_10 = arith.constant 0 : index
    %8 = vector.load %arg5[%c0_9, %c0_10] : memref<32x32xbf16, #tpu.memory_space<vmem>>, vector<32x32xbf16>
    %c0_11 = arith.constant 0 : index
    %c0_12 = arith.constant 0 : index
    %9 = vector.load %arg6[%c0_11, %c0_12] : memref<1x32xf32, #tpu.memory_space<vmem>>, vector<1x32xf32>
    %c0_13 = arith.constant 0 : index
    %c0_14 = arith.constant 0 : index
    %10 = vector.load %arg7[%c0_13, %c0_14] : memref<32x32xbf16, #tpu.memory_space<vmem>>, vector<32x32xbf16>
    %c0_15 = arith.constant 0 : index
    %c0_16 = arith.constant 0 : index
    %11 = vector.load %arg8[%c0_15, %c0_16] : memref<32x32xbf16, #tpu.memory_space<vmem>>, vector<32x32xbf16>
    %c0_17 = arith.constant 0 : index
    %c0_18 = arith.constant 0 : index
    %12 = vector.load %arg9[%c0_17, %c0_18] : memref<1x32xf32, #tpu.memory_space<vmem>>, vector<1x32xf32>
    %c0_19 = arith.constant 0 : index
    %c0_20 = arith.constant 0 : index
    %13 = vector.load %arg10[%c0_19, %c0_20] : memref<32x32xbf16, #tpu.memory_space<vmem>>, vector<32x32xbf16>
    %c0_21 = arith.constant 0 : index
    %c0_22 = arith.constant 0 : index
    %14 = vector.load %arg11[%c0_21, %c0_22] : memref<1x32xf32, #tpu.memory_space<vmem>>, vector<1x32xf32>
    %c0_23 = arith.constant 0 : index
    %c0_24 = arith.constant 0 : index
    %15 = vector.load %arg12[%c0_23, %c0_24] : memref<32x32xbf16, #tpu.memory_space<vmem>>, vector<32x32xbf16>
    %c0_25 = arith.constant 0 : index
    %c0_26 = arith.constant 0 : index
    %16 = vector.load %arg13[%c0_25, %c0_26] : memref<32x32xbf16, #tpu.memory_space<vmem>>, vector<32x32xbf16>
    %c0_27 = arith.constant 0 : index
    %c0_28 = arith.constant 0 : index
    %17 = vector.load %arg14[%c0_27, %c0_28] : memref<1x32xf32, #tpu.memory_space<vmem>>, vector<1x32xf32>
    %c0_29 = arith.constant 0 : index
    %c0_30 = arith.constant 0 : index
    %18 = vector.load %arg15[%c0_29, %c0_30] : memref<32x32xbf16, #tpu.memory_space<vmem>>, vector<32x32xbf16>
    %c0_31 = arith.constant 0 : index
    %c0_32 = arith.constant 0 : index
    %19 = vector.load %arg16[%c0_31, %c0_32] : memref<1x32xf32, #tpu.memory_space<vmem>>, vector<1x32xf32>
    %c0_33 = arith.constant 0 : index
    %c0_34 = arith.constant 0 : index
    %20 = vector.load %arg17[%c0_33, %c0_34] : memref<32x128xbf16, #tpu.memory_space<vmem>>, vector<32x128xbf16>
    %c0_35 = arith.constant 0 : index
    %c0_36 = arith.constant 0 : index
    %21 = vector.load %arg18[%c0_35, %c0_36] : memref<1x128xf32, #tpu.memory_space<vmem>>, vector<1x128xf32>
    %cst = arith.constant dense<0.000000e+00> : vector<8x32xf32>
    %22 = tpu.matmul %2, %6, %cst {dimension_numbers = #tpu.dot_dimension_numbers<[1], [0], [0], [1], [0, 0, 1, 1], [], []>} : vector<8x32xbf16>, vector<32x32xbf16>, vector<8x32xf32> -> vector<8x32xf32>
    %23 = vector.broadcast %7 : vector<1x32xf32> to vector<8x32xf32>
    %24 = arith.addf %23, %22 : vector<8x32xf32>
    %cst_37 = arith.constant 0.000000e+00 : f32
    %25 = vector.broadcast %cst_37 : f32 to vector<8x32xf32>
    %26 = arith.maximumf %24, %25 : vector<8x32xf32>
    %27 = arith.truncf %26 : vector<8x32xf32> to vector<8x32xbf16>
    %cst_38 = arith.constant dense<0.000000e+00> : vector<8x32xf32>
    %28 = tpu.matmul %27, %8, %cst_38 {dimension_numbers = #tpu.dot_dimension_numbers<[1], [0], [0], [1], [0, 0, 1, 1], [], []>} : vector<8x32xbf16>, vector<32x32xbf16>, vector<8x32xf32> -> vector<8x32xf32>
    %29 = vector.broadcast %9 : vector<1x32xf32> to vector<8x32xf32>
    %30 = arith.addf %28, %29 : vector<8x32xf32>
    %cst_39 = arith.constant 0.000000e+00 : f32
    %31 = vector.broadcast %cst_39 : f32 to vector<8x32xf32>
    %32 = arith.maximumf %30, %31 : vector<8x32xf32>
    %33 = arith.truncf %32 : vector<8x32xf32> to vector<8x32xbf16>
    %34 = vector.shape_cast %33 : vector<8x32xbf16> to vector<1x8x32xbf16>
    %cst_40 = arith.constant dense<0.000000e+00> : vector<8x32xf32>
    %35 = tpu.matmul %3, %6, %cst_40 {dimension_numbers = #tpu.dot_dimension_numbers<[1], [0], [0], [1], [0, 0, 1, 1], [], []>} : vector<8x32xbf16>, vector<32x32xbf16>, vector<8x32xf32> -> vector<8x32xf32>
    %36 = vector.broadcast %7 : vector<1x32xf32> to vector<8x32xf32>
    %37 = arith.addf %36, %35 : vector<8x32xf32>
    %cst_41 = arith.constant 0.000000e+00 : f32
    %38 = vector.broadcast %cst_41 : f32 to vector<8x32xf32>
    %39 = arith.maximumf %37, %38 : vector<8x32xf32>
    %40 = arith.truncf %39 : vector<8x32xf32> to vector<8x32xbf16>
    %cst_42 = arith.constant dense<0.000000e+00> : vector<8x32xf32>
    %41 = tpu.matmul %40, %8, %cst_42 {dimension_numbers = #tpu.dot_dimension_numbers<[1], [0], [0], [1], [0, 0, 1, 1], [], []>} : vector<8x32xbf16>, vector<32x32xbf16>, vector<8x32xf32> -> vector<8x32xf32>
    %42 = vector.broadcast %9 : vector<1x32xf32> to vector<8x32xf32>
    %43 = arith.addf %41, %42 : vector<8x32xf32>
    %cst_43 = arith.constant 0.000000e+00 : f32
    %44 = vector.broadcast %cst_43 : f32 to vector<8x32xf32>
    %45 = arith.maximumf %43, %44 : vector<8x32xf32>
    %46 = arith.truncf %45 : vector<8x32xf32> to vector<8x32xbf16>
    %47 = vector.shape_cast %46 : vector<8x32xbf16> to vector<1x8x32xbf16>
    "tpu.trace_start"() <{level = 10 : i32, message = "bpd,bhd->bph"}> : () -> ()
    %cst_44 = arith.constant dense<0.000000e+00> : vector<1x8x8xf32>
    %48 = tpu.matmul %34, %47, %cst_44 {dimension_numbers = #tpu.dot_dimension_numbers<[2], [2], [1], [1], [0, 0, 0, 1, 1, 1], [0], [0]>} : vector<1x8x32xbf16>, vector<1x8x32xbf16>, vector<1x8x8xf32> -> vector<1x8x8xf32>
    "tpu.trace_stop"() : () -> ()
    "tpu.trace_start"() <{level = 10 : i32, message = "bhd,bpd->bhp"}> : () -> ()
    %cst_45 = arith.constant dense<0.000000e+00> : vector<1x8x8xf32>
    %49 = tpu.matmul %47, %34, %cst_45 {dimension_numbers = #tpu.dot_dimension_numbers<[2], [2], [1], [1], [0, 0, 0, 1, 1, 1], [0], [0]>} : vector<1x8x32xbf16>, vector<1x8x32xbf16>, vector<1x8x8xf32> -> vector<1x8x8xf32>
    "tpu.trace_stop"() : () -> ()
    %cst_46 = arith.constant dense<0xFF800000> : vector<1x8xf32>
    %50 = vector.multi_reduction <maximumf>, %48, %cst_46 [2] : vector<1x8x8xf32> to vector<1x8xf32>
    %51 = vector.shape_cast %50 : vector<1x8xf32> to vector<1x8x1xf32>
    %52 = vector.broadcast %51 : vector<1x8x1xf32> to vector<1x8x8xf32>
    %53 = arith.subf %48, %52 : vector<1x8x8xf32>
    %54 = math.exp %53 : vector<1x8x8xf32>
    %cst_47 = arith.constant dense<0.000000e+00> : vector<1x8xf32>
    %55 = vector.multi_reduction <add>, %54, %cst_47 [2] : vector<1x8x8xf32> to vector<1x8xf32>
    %56 = vector.shape_cast %55 : vector<1x8xf32> to vector<1x8x1xf32>
    %57 = tpu.reciprocal %56 {approx = true} : vector<1x8x1xf32> -> vector<1x8x1xf32>
    %58 = vector.broadcast %57 : vector<1x8x1xf32> to vector<1x8x8xf32>
    %59 = arith.mulf %54, %58 : vector<1x8x8xf32>
    %cst_48 = arith.constant dense<0xFF800000> : vector<1x8xf32>
    %60 = vector.multi_reduction <maximumf>, %49, %cst_48 [2] : vector<1x8x8xf32> to vector<1x8xf32>
    %61 = vector.shape_cast %60 : vector<1x8xf32> to vector<1x8x1xf32>
    %62 = vector.broadcast %61 : vector<1x8x1xf32> to vector<1x8x8xf32>
    %63 = arith.subf %49, %62 : vector<1x8x8xf32>
    %64 = math.exp %63 : vector<1x8x8xf32>
    %cst_49 = arith.constant dense<0.000000e+00> : vector<1x8xf32>
    %65 = vector.multi_reduction <add>, %64, %cst_49 [2] : vector<1x8x8xf32> to vector<1x8xf32>
    %66 = vector.shape_cast %65 : vector<1x8xf32> to vector<1x8x1xf32>
    %67 = tpu.reciprocal %66 {approx = true} : vector<1x8x1xf32> -> vector<1x8x1xf32>
    %68 = vector.broadcast %67 : vector<1x8x1xf32> to vector<1x8x8xf32>
    %69 = arith.mulf %64, %68 : vector<1x8x8xf32>
    %70 = vector.extract_strided_slice %59 {offsets = [0, 0, 0], sizes = [1, 8, 1], strides = [1, 1, 1]} : vector<1x8x8xf32> to vector<1x8x1xf32>
    %71 = vector.extract_strided_slice %5 {offsets = [0, 0, 0], sizes = [1, 1, 32], strides = [1, 1, 1]} : vector<1x8x32xf32> to vector<1x1x32xf32>
    %72 = vector.broadcast %70 : vector<1x8x1xf32> to vector<1x8x32xf32>
    %73 = vector.broadcast %71 : vector<1x1x32xf32> to vector<1x8x32xf32>
    %74 = arith.mulf %72, %73 : vector<1x8x32xf32>
    %75 = vector.extract_strided_slice %59 {offsets = [0, 0, 1], sizes = [1, 8, 1], strides = [1, 1, 1]} : vector<1x8x8xf32> to vector<1x8x1xf32>
    %76 = vector.extract_strided_slice %5 {offsets = [0, 1, 0], sizes = [1, 1, 32], strides = [1, 1, 1]} : vector<1x8x32xf32> to vector<1x1x32xf32>
    %77 = vector.broadcast %75 : vector<1x8x1xf32> to vector<1x8x32xf32>
    %78 = vector.broadcast %76 : vector<1x1x32xf32> to vector<1x8x32xf32>
    %79 = arith.mulf %77, %78 : vector<1x8x32xf32>
    %80 = arith.addf %74, %79 : vector<1x8x32xf32>
    %81 = vector.extract_strided_slice %59 {offsets = [0, 0, 2], sizes = [1, 8, 1], strides = [1, 1, 1]} : vector<1x8x8xf32> to vector<1x8x1xf32>
    %82 = vector.extract_strided_slice %5 {offsets = [0, 2, 0], sizes = [1, 1, 32], strides = [1, 1, 1]} : vector<1x8x32xf32> to vector<1x1x32xf32>
    %83 = vector.broadcast %81 : vector<1x8x1xf32> to vector<1x8x32xf32>
    %84 = vector.broadcast %82 : vector<1x1x32xf32> to vector<1x8x32xf32>
    %85 = arith.mulf %83, %84 : vector<1x8x32xf32>
    %86 = arith.addf %80, %85 : vector<1x8x32xf32>
    %87 = vector.extract_strided_slice %59 {offsets = [0, 0, 3], sizes = [1, 8, 1], strides = [1, 1, 1]} : vector<1x8x8xf32> to vector<1x8x1xf32>
    %88 = vector.extract_strided_slice %5 {offsets = [0, 3, 0], sizes = [1, 1, 32], strides = [1, 1, 1]} : vector<1x8x32xf32> to vector<1x1x32xf32>
    %89 = vector.broadcast %87 : vector<1x8x1xf32> to vector<1x8x32xf32>
    %90 = vector.broadcast %88 : vector<1x1x32xf32> to vector<1x8x32xf32>
    %91 = arith.mulf %89, %90 : vector<1x8x32xf32>
    %92 = arith.addf %86, %91 : vector<1x8x32xf32>
    %93 = vector.extract_strided_slice %59 {offsets = [0, 0, 4], sizes = [1, 8, 1], strides = [1, 1, 1]} : vector<1x8x8xf32> to vector<1x8x1xf32>
    %94 = vector.extract_strided_slice %5 {offsets = [0, 4, 0], sizes = [1, 1, 32], strides = [1, 1, 1]} : vector<1x8x32xf32> to vector<1x1x32xf32>
    %95 = vector.broadcast %93 : vector<1x8x1xf32> to vector<1x8x32xf32>
    %96 = vector.broadcast %94 : vector<1x1x32xf32> to vector<1x8x32xf32>
    %97 = arith.mulf %95, %96 : vector<1x8x32xf32>
    %98 = arith.addf %92, %97 : vector<1x8x32xf32>
    %99 = vector.extract_strided_slice %59 {offsets = [0, 0, 5], sizes = [1, 8, 1], strides = [1, 1, 1]} : vector<1x8x8xf32> to vector<1x8x1xf32>
    %100 = vector.extract_strided_slice %5 {offsets = [0, 5, 0], sizes = [1, 1, 32], strides = [1, 1, 1]} : vector<1x8x32xf32> to vector<1x1x32xf32>
    %101 = vector.broadcast %99 : vector<1x8x1xf32> to vector<1x8x32xf32>
    %102 = vector.broadcast %100 : vector<1x1x32xf32> to vector<1x8x32xf32>
    %103 = arith.mulf %101, %102 : vector<1x8x32xf32>
    %104 = arith.addf %98, %103 : vector<1x8x32xf32>
    %105 = vector.extract_strided_slice %59 {offsets = [0, 0, 6], sizes = [1, 8, 1], strides = [1, 1, 1]} : vector<1x8x8xf32> to vector<1x8x1xf32>
    %106 = vector.extract_strided_slice %5 {offsets = [0, 6, 0], sizes = [1, 1, 32], strides = [1, 1, 1]} : vector<1x8x32xf32> to vector<1x1x32xf32>
    %107 = vector.broadcast %105 : vector<1x8x1xf32> to vector<1x8x32xf32>
    %108 = vector.broadcast %106 : vector<1x1x32xf32> to vector<1x8x32xf32>
    %109 = arith.mulf %107, %108 : vector<1x8x32xf32>
    %110 = arith.addf %104, %109 : vector<1x8x32xf32>
    %111 = vector.extract_strided_slice %59 {offsets = [0, 0, 7], sizes = [1, 8, 1], strides = [1, 1, 1]} : vector<1x8x8xf32> to vector<1x8x1xf32>
    %112 = vector.extract_strided_slice %5 {offsets = [0, 7, 0], sizes = [1, 1, 32], strides = [1, 1, 1]} : vector<1x8x32xf32> to vector<1x1x32xf32>
    %113 = vector.broadcast %111 : vector<1x8x1xf32> to vector<1x8x32xf32>
    %114 = vector.broadcast %112 : vector<1x1x32xf32> to vector<1x8x32xf32>
    %115 = arith.mulf %113, %114 : vector<1x8x32xf32>
    %116 = arith.addf %110, %115 : vector<1x8x32xf32>
    %117 = vector.extract_strided_slice %69 {offsets = [0, 0, 0], sizes = [1, 8, 1], strides = [1, 1, 1]} : vector<1x8x8xf32> to vector<1x8x1xf32>
    %118 = vector.extract_strided_slice %4 {offsets = [0, 0, 0], sizes = [1, 1, 32], strides = [1, 1, 1]} : vector<1x8x32xf32> to vector<1x1x32xf32>
    %119 = vector.broadcast %117 : vector<1x8x1xf32> to vector<1x8x32xf32>
    %120 = vector.broadcast %118 : vector<1x1x32xf32> to vector<1x8x32xf32>
    %121 = arith.mulf %119, %120 : vector<1x8x32xf32>
    %122 = vector.extract_strided_slice %69 {offsets = [0, 0, 1], sizes = [1, 8, 1], strides = [1, 1, 1]} : vector<1x8x8xf32> to vector<1x8x1xf32>
    %123 = vector.extract_strided_slice %4 {offsets = [0, 1, 0], sizes = [1, 1, 32], strides = [1, 1, 1]} : vector<1x8x32xf32> to vector<1x1x32xf32>
    %124 = vector.broadcast %122 : vector<1x8x1xf32> to vector<1x8x32xf32>
    %125 = vector.broadcast %123 : vector<1x1x32xf32> to vector<1x8x32xf32>
    %126 = arith.mulf %124, %125 : vector<1x8x32xf32>
    %127 = arith.addf %121, %126 : vector<1x8x32xf32>
    %128 = vector.extract_strided_slice %69 {offsets = [0, 0, 2], sizes = [1, 8, 1], strides = [1, 1, 1]} : vector<1x8x8xf32> to vector<1x8x1xf32>
    %129 = vector.extract_strided_slice %4 {offsets = [0, 2, 0], sizes = [1, 1, 32], strides = [1, 1, 1]} : vector<1x8x32xf32> to vector<1x1x32xf32>
    %130 = vector.broadcast %128 : vector<1x8x1xf32> to vector<1x8x32xf32>
    %131 = vector.broadcast %129 : vector<1x1x32xf32> to vector<1x8x32xf32>
    %132 = arith.mulf %130, %131 : vector<1x8x32xf32>
    %133 = arith.addf %127, %132 : vector<1x8x32xf32>
    %134 = vector.extract_strided_slice %69 {offsets = [0, 0, 3], sizes = [1, 8, 1], strides = [1, 1, 1]} : vector<1x8x8xf32> to vector<1x8x1xf32>
    %135 = vector.extract_strided_slice %4 {offsets = [0, 3, 0], sizes = [1, 1, 32], strides = [1, 1, 1]} : vector<1x8x32xf32> to vector<1x1x32xf32>
    %136 = vector.broadcast %134 : vector<1x8x1xf32> to vector<1x8x32xf32>
    %137 = vector.broadcast %135 : vector<1x1x32xf32> to vector<1x8x32xf32>
    %138 = arith.mulf %136, %137 : vector<1x8x32xf32>
    %139 = arith.addf %133, %138 : vector<1x8x32xf32>
    %140 = vector.extract_strided_slice %69 {offsets = [0, 0, 4], sizes = [1, 8, 1], strides = [1, 1, 1]} : vector<1x8x8xf32> to vector<1x8x1xf32>
    %141 = vector.extract_strided_slice %4 {offsets = [0, 4, 0], sizes = [1, 1, 32], strides = [1, 1, 1]} : vector<1x8x32xf32> to vector<1x1x32xf32>
    %142 = vector.broadcast %140 : vector<1x8x1xf32> to vector<1x8x32xf32>
    %143 = vector.broadcast %141 : vector<1x1x32xf32> to vector<1x8x32xf32>
    %144 = arith.mulf %142, %143 : vector<1x8x32xf32>
    %145 = arith.addf %139, %144 : vector<1x8x32xf32>
    %146 = vector.extract_strided_slice %69 {offsets = [0, 0, 5], sizes = [1, 8, 1], strides = [1, 1, 1]} : vector<1x8x8xf32> to vector<1x8x1xf32>
    %147 = vector.extract_strided_slice %4 {offsets = [0, 5, 0], sizes = [1, 1, 32], strides = [1, 1, 1]} : vector<1x8x32xf32> to vector<1x1x32xf32>
    %148 = vector.broadcast %146 : vector<1x8x1xf32> to vector<1x8x32xf32>
    %149 = vector.broadcast %147 : vector<1x1x32xf32> to vector<1x8x32xf32>
    %150 = arith.mulf %148, %149 : vector<1x8x32xf32>
    %151 = arith.addf %145, %150 : vector<1x8x32xf32>
    %152 = vector.extract_strided_slice %69 {offsets = [0, 0, 6], sizes = [1, 8, 1], strides = [1, 1, 1]} : vector<1x8x8xf32> to vector<1x8x1xf32>
    %153 = vector.extract_strided_slice %4 {offsets = [0, 6, 0], sizes = [1, 1, 32], strides = [1, 1, 1]} : vector<1x8x32xf32> to vector<1x1x32xf32>
    %154 = vector.broadcast %152 : vector<1x8x1xf32> to vector<1x8x32xf32>
    %155 = vector.broadcast %153 : vector<1x1x32xf32> to vector<1x8x32xf32>
    %156 = arith.mulf %154, %155 : vector<1x8x32xf32>
    %157 = arith.addf %151, %156 : vector<1x8x32xf32>
    %158 = vector.extract_strided_slice %69 {offsets = [0, 0, 7], sizes = [1, 8, 1], strides = [1, 1, 1]} : vector<1x8x8xf32> to vector<1x8x1xf32>
    %159 = vector.extract_strided_slice %4 {offsets = [0, 7, 0], sizes = [1, 1, 32], strides = [1, 1, 1]} : vector<1x8x32xf32> to vector<1x1x32xf32>
    %160 = vector.broadcast %158 : vector<1x8x1xf32> to vector<1x8x32xf32>
    %161 = vector.broadcast %159 : vector<1x1x32xf32> to vector<1x8x32xf32>
    %162 = arith.mulf %160, %161 : vector<1x8x32xf32>
    %163 = arith.addf %157, %162 : vector<1x8x32xf32>
    %164 = vector.shape_cast %116 : vector<1x8x32xf32> to vector<8x32xf32>
    %165 = arith.truncf %164 : vector<8x32xf32> to vector<8x32xbf16>
    %cst_50 = arith.constant dense<0.000000e+00> : vector<8x32xf32>
    %166 = tpu.matmul %2, %10, %cst_50 {dimension_numbers = #tpu.dot_dimension_numbers<[1], [0], [0], [1], [0, 0, 1, 1], [], []>} : vector<8x32xbf16>, vector<32x32xbf16>, vector<8x32xf32> -> vector<8x32xf32>
    %167 = vector.broadcast %12 : vector<1x32xf32> to vector<8x32xf32>
    %168 = arith.addf %167, %166 : vector<8x32xf32>
    %cst_51 = arith.constant dense<0.000000e+00> : vector<8x32xf32>
    %169 = tpu.matmul %165, %11, %cst_51 {dimension_numbers = #tpu.dot_dimension_numbers<[1], [0], [0], [1], [0, 0, 1, 1], [], []>} : vector<8x32xbf16>, vector<32x32xbf16>, vector<8x32xf32> -> vector<8x32xf32>
    %170 = arith.addf %168, %169 : vector<8x32xf32>
    %cst_52 = arith.constant 0.000000e+00 : f32
    %171 = vector.broadcast %cst_52 : f32 to vector<8x32xf32>
    %172 = arith.maximumf %170, %171 : vector<8x32xf32>
    %173 = arith.truncf %172 : vector<8x32xf32> to vector<8x32xbf16>
    %cst_53 = arith.constant dense<0.000000e+00> : vector<8x32xf32>
    %174 = tpu.matmul %173, %13, %cst_53 {dimension_numbers = #tpu.dot_dimension_numbers<[1], [0], [0], [1], [0, 0, 1, 1], [], []>} : vector<8x32xbf16>, vector<32x32xbf16>, vector<8x32xf32> -> vector<8x32xf32>
    %175 = vector.broadcast %14 : vector<1x32xf32> to vector<8x32xf32>
    %176 = arith.addf %174, %175 : vector<8x32xf32>
    %cst_54 = arith.constant 0.000000e+00 : f32
    %177 = vector.broadcast %cst_54 : f32 to vector<8x32xf32>
    %178 = arith.maximumf %176, %177 : vector<8x32xf32>
    %179 = vector.shape_cast %163 : vector<1x8x32xf32> to vector<8x32xf32>
    %180 = arith.truncf %179 : vector<8x32xf32> to vector<8x32xbf16>
    %cst_55 = arith.constant dense<0.000000e+00> : vector<8x32xf32>
    %181 = tpu.matmul %3, %10, %cst_55 {dimension_numbers = #tpu.dot_dimension_numbers<[1], [0], [0], [1], [0, 0, 1, 1], [], []>} : vector<8x32xbf16>, vector<32x32xbf16>, vector<8x32xf32> -> vector<8x32xf32>
    %182 = vector.broadcast %12 : vector<1x32xf32> to vector<8x32xf32>
    %183 = arith.addf %182, %181 : vector<8x32xf32>
    %cst_56 = arith.constant dense<0.000000e+00> : vector<8x32xf32>
    %184 = tpu.matmul %180, %11, %cst_56 {dimension_numbers = #tpu.dot_dimension_numbers<[1], [0], [0], [1], [0, 0, 1, 1], [], []>} : vector<8x32xbf16>, vector<32x32xbf16>, vector<8x32xf32> -> vector<8x32xf32>
    %185 = arith.addf %183, %184 : vector<8x32xf32>
    %cst_57 = arith.constant 0.000000e+00 : f32
    %186 = vector.broadcast %cst_57 : f32 to vector<8x32xf32>
    %187 = arith.maximumf %185, %186 : vector<8x32xf32>
    %188 = arith.truncf %187 : vector<8x32xf32> to vector<8x32xbf16>
    %cst_58 = arith.constant dense<0.000000e+00> : vector<8x32xf32>
    %189 = tpu.matmul %188, %13, %cst_58 {dimension_numbers = #tpu.dot_dimension_numbers<[1], [0], [0], [1], [0, 0, 1, 1], [], []>} : vector<8x32xbf16>, vector<32x32xbf16>, vector<8x32xf32> -> vector<8x32xf32>
    %190 = vector.broadcast %14 : vector<1x32xf32> to vector<8x32xf32>
    %191 = arith.addf %189, %190 : vector<8x32xf32>
    %cst_59 = arith.constant 0.000000e+00 : f32
    %192 = vector.broadcast %cst_59 : f32 to vector<8x32xf32>
    %193 = arith.maximumf %191, %192 : vector<8x32xf32>
    %194 = vector.shape_cast %178 : vector<8x32xf32> to vector<1x8x32xf32>
    %cst_60 = arith.constant dense<0.000000e+00> : vector<1x32xf32>
    %195 = vector.multi_reduction <add>, %194, %cst_60 [1] : vector<1x8x32xf32> to vector<1x32xf32>
    %196 = vector.shape_cast %193 : vector<8x32xf32> to vector<1x8x32xf32>
    %cst_61 = arith.constant dense<0.000000e+00> : vector<1x32xf32>
    %197 = vector.multi_reduction <add>, %196, %cst_61 [1] : vector<1x8x32xf32> to vector<1x32xf32>
    %198 = arith.truncf %195 : vector<1x32xf32> to vector<1x32xbf16>
    %199 = arith.truncf %197 : vector<1x32xf32> to vector<1x32xbf16>
    %cst_62 = arith.constant dense<0.000000e+00> : vector<1x32xf32>
    %200 = tpu.matmul %198, %15, %cst_62 {dimension_numbers = #tpu.dot_dimension_numbers<[1], [0], [0], [1], [0, 0, 1, 1], [], []>} : vector<1x32xbf16>, vector<32x32xbf16>, vector<1x32xf32> -> vector<1x32xf32>
    %201 = arith.addf %17, %200 : vector<1x32xf32>
    %cst_63 = arith.constant dense<0.000000e+00> : vector<1x32xf32>
    %202 = tpu.matmul %199, %16, %cst_63 {dimension_numbers = #tpu.dot_dimension_numbers<[1], [0], [0], [1], [0, 0, 1, 1], [], []>} : vector<1x32xbf16>, vector<32x32xbf16>, vector<1x32xf32> -> vector<1x32xf32>
    %203 = arith.addf %201, %202 : vector<1x32xf32>
    %cst_64 = arith.constant 0.000000e+00 : f32
    %204 = vector.broadcast %cst_64 : f32 to vector<1x32xf32>
    %205 = arith.maximumf %203, %204 : vector<1x32xf32>
    %206 = arith.truncf %205 : vector<1x32xf32> to vector<1x32xbf16>
    %cst_65 = arith.constant dense<0.000000e+00> : vector<1x32xf32>
    %207 = tpu.matmul %206, %18, %cst_65 {dimension_numbers = #tpu.dot_dimension_numbers<[1], [0], [0], [1], [0, 0, 1, 1], [], []>} : vector<1x32xbf16>, vector<32x32xbf16>, vector<1x32xf32> -> vector<1x32xf32>
    %208 = arith.addf %207, %19 : vector<1x32xf32>
    %cst_66 = arith.constant 0.000000e+00 : f32
    %209 = vector.broadcast %cst_66 : f32 to vector<1x32xf32>
    %210 = arith.maximumf %208, %209 : vector<1x32xf32>
    %211 = arith.truncf %210 : vector<1x32xf32> to vector<1x32xbf16>
    %cst_67 = arith.constant dense<0.000000e+00> : vector<1x128xf32>
    %212 = tpu.matmul %211, %20, %cst_67 {dimension_numbers = #tpu.dot_dimension_numbers<[1], [0], [0], [1], [0, 0, 1, 1], [], []>} : vector<1x32xbf16>, vector<32x128xbf16>, vector<1x128xf32> -> vector<1x128xf32>
    %213 = arith.addf %212, %21 : vector<1x128xf32>
    %214 = tpu.iota {dimensions = array<i32: 1>} : vector<1x128xi32>
    %c3_i32 = arith.constant 3 : i32
    %215 = vector.broadcast %c3_i32 : i32 to vector<1x128xi32>
    %216 = arith.cmpi slt, %214, %215 : vector<1x128xi32>
    %cst_68 = arith.constant -1.000000e+30 : f32
    %217 = vector.broadcast %cst_68 : f32 to vector<1x128xf32>
    %218 = arith.select %216, %213, %217 : vector<1x128xi1>, vector<1x128xf32>
    %cst_69 = arith.constant dense<0xFF800000> : vector<1xf32>
    %219 = vector.multi_reduction <maximumf>, %218, %cst_69 [1] : vector<1x128xf32> to vector<1xf32>
    %220 = vector.shape_cast %219 : vector<1xf32> to vector<1x1xf32>
    %221 = vector.broadcast %220 : vector<1x1xf32> to vector<1x128xf32>
    %222 = arith.subf %218, %221 : vector<1x128xf32>
    %223 = math.exp %222 : vector<1x128xf32>
    %cst_70 = arith.constant dense<0.000000e+00> : vector<1xf32>
    %224 = vector.multi_reduction <add>, %223, %cst_70 [1] : vector<1x128xf32> to vector<1xf32>
    %225 = vector.shape_cast %224 : vector<1xf32> to vector<1x1xf32>
    %226 = math.log %225 : vector<1x1xf32>
    %227 = arith.addf %226, %220 : vector<1x1xf32>
    %228 = vector.broadcast %227 : vector<1x1xf32> to vector<1x128xf32>
    %229 = arith.subf %213, %228 : vector<1x128xf32>
    %c0_71 = arith.constant 0 : index
    %c0_72 = arith.constant 0 : index
    %c0_73 = arith.constant 0 : index
    %230 = vector.load %arg19[%c0_71, %c0_72, %c0_73] : memref<1x1x128xf32, #tpu.memory_space<vmem>>, vector<1x1x128xf32>
    %231 = vector.shape_cast %230 : vector<1x1x128xf32> to vector<1x128xf32>
    %232 = vector.shape_cast %229 : vector<1x128xf32> to vector<1x1x128xf32>
    tpu.vector_store %arg19[%c0_71, %c0_72, %c0_73], %232 {strides = array<i32>} : memref<1x1x128xf32, #tpu.memory_space<vmem>>, vector<1x1x128xf32>,
    return
  }
  func.func @transform_0(%arg0: i32) -> (i32, i32, i32) {
    %c0_i32 = arith.constant 0 : i32
    %c0_i32_0 = arith.constant 0 : i32
    %c0_i32_1 = arith.constant 0 : i32
    return %arg0, %c0_i32, %c0_i32_0 : i32, i32, i32
  }
  func.func @transform_1(%arg0: i32) -> (i32, i32, i32) {
    %c0_i32 = arith.constant 0 : i32
    %c0_i32_0 = arith.constant 0 : i32
    %c0_i32_1 = arith.constant 0 : i32
    return %arg0, %c0_i32, %c0_i32_0 : i32, i32, i32
  }
  func.func @transform_2(%arg0: i32) -> (i32, i32) {
    %c0_i32 = arith.constant 0 : i32
    %c0_i32_0 = arith.constant 0 : i32
    %c0_i32_1 = arith.constant 0 : i32
    return %c0_i32, %c0_i32_0 : i32, i32
  }
  func.func @transform_3(%arg0: i32) -> (i32, i32) {
    %c0_i32 = arith.constant 0 : i32
    %c0_i32_0 = arith.constant 0 : i32
    %c0_i32_1 = arith.constant 0 : i32
    return %c0_i32, %c0_i32_0 : i32, i32
  }
  func.func @transform_4(%arg0: i32) -> (i32, i32) {
    %c0_i32 = arith.constant 0 : i32
    %c0_i32_0 = arith.constant 0 : i32
    %c0_i32_1 = arith.constant 0 : i32
    return %c0_i32, %c0_i32_0 : i32, i32
  }
  func.func @transform_5(%arg0: i32) -> (i32, i32) {
    %c0_i32 = arith.constant 0 : i32
    %c0_i32_0 = arith.constant 0 : i32
    %c0_i32_1 = arith.constant 0 : i32
    return %c0_i32, %c0_i32_0 : i32, i32
  }
  func.func @transform_6(%arg0: i32) -> (i32, i32) {
    %c0_i32 = arith.constant 0 : i32
    %c0_i32_0 = arith.constant 0 : i32
    %c0_i32_1 = arith.constant 0 : i32
    return %c0_i32, %c0_i32_0 : i32, i32
  }
  func.func @transform_7(%arg0: i32) -> (i32, i32) {
    %c0_i32 = arith.constant 0 : i32
    %c0_i32_0 = arith.constant 0 : i32
    %c0_i32_1 = arith.constant 0 : i32
    return %c0_i32, %c0_i32_0 : i32, i32
  }
  func.func @transform_8(%arg0: i32) -> (i32, i32) {
    %c0_i32 = arith.constant 0 : i32
    %c0_i32_0 = arith.constant 0 : i32
    %c0_i32_1 = arith.constant 0 : i32
    return %c0_i32, %c0_i32_0 : i32, i32
  }
  func.func @transform_9(%arg0: i32) -> (i32, i32) {
    %c0_i32 = arith.constant 0 : i32
    %c0_i32_0 = arith.constant 0 : i32
    %c0_i32_1 = arith.constant 0 : i32
    return %c0_i32, %c0_i32_0 : i32, i32
  }
  func.func @transform_10(%arg0: i32) -> (i32, i32) {
    %c0_i32 = arith.constant 0 : i32
    %c0_i32_0 = arith.constant 0 : i32
    %c0_i32_1 = arith.constant 0 : i32
    return %c0_i32, %c0_i32_0 : i32, i32
  }
  func.func @transform_11(%arg0: i32) -> (i32, i32) {
    %c0_i32 = arith.constant 0 : i32
    %c0_i32_0 = arith.constant 0 : i32
    %c0_i32_1 = arith.constant 0 : i32
    return %c0_i32, %c0_i32_0 : i32, i32
  }
  func.func @transform_12(%arg0: i32) -> (i32, i32) {
    %c0_i32 = arith.constant 0 : i32
    %c0_i32_0 = arith.constant 0 : i32
    %c0_i32_1 = arith.constant 0 : i32
    return %c0_i32, %c0_i32_0 : i32, i32
  }
  func.func @transform_13(%arg0: i32) -> (i32, i32) {
    %c0_i32 = arith.constant 0 : i32
    %c0_i32_0 = arith.constant 0 : i32
    %c0_i32_1 = arith.constant 0 : i32
    return %c0_i32, %c0_i32_0 : i32, i32
  }
  func.func @transform_14(%arg0: i32) -> (i32, i32) {
    %c0_i32 = arith.constant 0 : i32
    %c0_i32_0 = arith.constant 0 : i32
    %c0_i32_1 = arith.constant 0 : i32
    return %c0_i32, %c0_i32_0 : i32, i32
  }
  func.func @transform_15(%arg0: i32) -> (i32, i32) {
    %c0_i32 = arith.constant 0 : i32
    %c0_i32_0 = arith.constant 0 : i32
    %c0_i32_1 = arith.constant 0 : i32
    return %c0_i32, %c0_i32_0 : i32, i32
  }
  func.func @transform_16(%arg0: i32) -> (i32, i32) {
    %c0_i32 = arith.constant 0 : i32
    %c0_i32_0 = arith.constant 0 : i32
    %c0_i32_1 = arith.constant 0 : i32
    return %c0_i32, %c0_i32_0 : i32, i32
  }
  func.func @transform_17(%arg0: i32) -> (i32, i32) {
    %c0_i32 = arith.constant 0 : i32
    %c0_i32_0 = arith.constant 0 : i32
    %c0_i32_1 = arith.constant 0 : i32
    return %c0_i32, %c0_i32_0 : i32, i32
  }
  func.func @transform_18(%arg0: i32) -> (i32, i32, i32) {
    %c0_i32 = arith.constant 0 : i32
    %c0_i32_0 = arith.constant 0 : i32
    %c0_i32_1 = arith.constant 0 : i32
    return %arg0, %c0_i32, %c0_i32_0 : i32, i32, i32
  }
}

</mosaic_0001>

<llo_original>
// kernel: tpu_custom_call.1
$region0: #{tpu_custom_call.1}
  #allocation0 [shape = 'u32[]', space=smem, size = 0x4, offset = 0x4, fixed_abs, tag = 'smem constant byte address 0x4 - core index']
  #allocation1 [shape = 'u32[72,128]{1,0:T(1,128)}', space=vmem, size = 0x9000, scoped, tag = 'internal scratch']
  %s0 = inlined_call_operand.hbm [shape: bf16[2,8,32], index: 0, kind: input, shape index: {}]
  %s1 = inlined_call_operand.hbm [shape: bf16[2,8,32], index: 1, kind: input, shape index: {}]
  %s2 = inlined_call_operand.hbm [shape: bf16[32,32], index: 2, kind: input, shape index: {}]
  %s3 = inlined_call_operand.vmem [shape: f32[1,32], index: 3, kind: input, shape index: {}]
  %s4 = inlined_call_operand.hbm [shape: bf16[32,32], index: 4, kind: input, shape index: {}]
  %s5 = inlined_call_operand.vmem [shape: f32[1,32], index: 5, kind: input, shape index: {}]
  %s6 = inlined_call_operand.hbm [shape: bf16[32,32], index: 6, kind: input, shape index: {}]
  %s7 = inlined_call_operand.hbm [shape: bf16[32,32], index: 7, kind: input, shape index: {}]
  %s8 = inlined_call_operand.vmem [shape: f32[1,32], index: 8, kind: input, shape index: {}]
  %s9 = inlined_call_operand.hbm [shape: bf16[32,32], index: 9, kind: input, shape index: {}]
  %s10 = inlined_call_operand.vmem [shape: f32[1,32], index: 10, kind: input, shape index: {}]
  %s11 = inlined_call_operand.hbm [shape: bf16[32,32], index: 11, kind: input, shape index: {}]
  %s12 = inlined_call_operand.hbm [shape: bf16[32,32], index: 12, kind: input, shape index: {}]
  %s13 = inlined_call_operand.vmem [shape: f32[1,32], index: 13, kind: input, shape index: {}]
  %s14 = inlined_call_operand.hbm [shape: bf16[32,32], index: 14, kind: input, shape index: {}]
  %s15 = inlined_call_operand.vmem [shape: f32[1,32], index: 15, kind: input, shape index: {}]
  %s16 = inlined_call_operand.hbm [shape: bf16[32,128], index: 16, kind: input, shape index: {}]
  %s17 = inlined_call_operand.vmem [shape: f32[1,128], index: 17, kind: input, shape index: {}]
  %s18 = inlined_call_operand.hbm [shape: f32[2,1,128], index: 18, kind: output, shape index: {}]
  %s19 = sld [smem:[#allocation0]]
  $region149: #{tpu_custom_call.1} parent=0
    _
  %s21 = ssub.s32 1, %s19
  %s22 = scalar_select 0, %s21, %s19
  $region1: #{tpu_custom_call.1} parent=0
    #allocation2 [shape = 'u8[4096]{0}', space=vmem, size = 0x1000, scoped, tag = 'input window, operand 0']
    #allocation3 [shape = 's32[2]{0}', space=sflag, size = 0x8, scoped, tag = 'scoped memory for tpu_custom_call.1']
    #allocation4 [shape = 's32[2]{0}', space=sflag, size = 0x8, scoped, tag = 'scoped memory for tpu_custom_call.1']
    #allocation5 [shape = 'u8[4096]{0}', space=vmem, size = 0x1000, scoped, tag = 'input window, operand 1']
    #allocation6 [shape = 's32[2]{0}', space=sflag, size = 0x8, scoped, tag = 'scoped memory for tpu_custom_call.1']
    #allocation7 [shape = 'u8[8192]{0}', space=vmem, size = 0x2000, scoped, tag = 'input window, operand 2, single buffered']
    #allocation8 [shape = 'u8[8192]{0}', space=vmem, size = 0x2000, scoped, tag = 'input window, operand 4, single buffered']
    #allocation9 [shape = 's32[1]{0}', space=sflag, size = 0x4, scoped, tag = 'scoped memory for tpu_custom_call.1']
    #allocation10 [shape = 'u8[8192]{0}', space=vmem, size = 0x2000, scoped, tag = 'input window, operand 6, single buffered']
    #allocation11 [shape = 'u8[8192]{0}', space=vmem, size = 0x2000, scoped, tag = 'input window, operand 7, single buffered']
    #allocation12 [shape = 's32[1]{0}', space=sflag, size = 0x4, scoped, tag = 'scoped memory for tpu_custom_call.1']
    #allocation13 [shape = 'u8[8192]{0}', space=vmem, size = 0x2000, scoped, tag = 'input window, operand 9, single buffered']
    #allocation14 [shape = 'u8[8192]{0}', space=vmem, size = 0x2000, scoped, tag = 'input window, operand 11, single buffered']
    #allocation15 [shape = 's32[1]{0}', space=sflag, size = 0x4, scoped, tag = 'scoped memory for tpu_custom_call.1']
    #allocation16 [shape = 'u8[8192]{0}', space=vmem, size = 0x2000, scoped, tag = 'input window, operand 12, single buffered']
    #allocation17 [shape = 'u8[8192]{0}', space=vmem, size = 0x2000, scoped, tag = 'input window, operand 14, single buffered']
    #allocation18 [shape = 's32[1]{0}', space=sflag, size = 0x4, scoped, tag = 'scoped memory for tpu_custom_call.1']
    #allocation19 [shape = 'u8[8192]{0}', space=vmem, size = 0x2000, scoped, tag = 'input window, operand 16, single buffered']
    #allocation20 [shape = 'u8[1024]{0}', space=vmem, size = 0x400, scoped, tag = 'output window, operand 0']
    %23 = vsyncpa [#allocation3], 0
    %s24 = scalar_lea.sflag [#allocation3], 1
    %25 = vsyncpa %s24, 0
    %26 = vsyncpa [#allocation6], 0
    %s27 = scalar_lea.sflag [#allocation6], 1
    %28 = vsyncpa %s27, 0
    %29 = vsyncpa [#allocation9], 0
    %30 = vsyncpa [#allocation12], 0
    %31 = vsyncpa [#allocation15], 0
    %32 = vsyncpa [#allocation18], 0
    %33 = vsyncpa [#allocation4], 0
    %s34 = scalar_lea.sflag [#allocation4], 1
    %35 = vsyncpa %s34, 0
    loop: start=0, step=1, limit=4
    $region2: #{tpu_custom_call.1} parent=1 // loop_pre_header
      _
    $region3: #{tpu_custom_call.1} parent=1 // loop_header
      %s37 = sphi 0, %s41
      %p38 = scmp.ge.s32.totalorder %s37, 4
      %s47 = sphi 0, %s49
      %s50 = sphi 0, %s47
      %s51 = sphi 0, %s50
      %s67 = sphi 0, %s51
      %s73 = sphi 0, %s75
      %s76 = sphi 0, %s73
      %s77 = sphi 0, %s76
      %s93 = sphi 0, %s77
      %s97 = sphi 0, %s97
      %s99 = sphi 0, %s97
      %s100 = sphi 0, %s99
      %s114 = sphi 0, %s100
      %s118 = sphi 0, %s118
      %s120 = sphi 0, %s118
      %s121 = sphi 0, %s120
      %s135 = sphi 0, %s121
      %s139 = sphi 0, %s139
      %s141 = sphi 0, %s139
      %s142 = sphi 0, %s141
      %s156 = sphi 0, %s142
      %s160 = sphi 0, %s160
      %s162 = sphi 0, %s160
      %s163 = sphi 0, %s162
      %s177 = sphi 0, %s163
      %s181 = sphi 0, %s181
      %s183 = sphi 0, %s181
      %s184 = sphi 0, %s183
      %s198 = sphi 0, %s184
      %s202 = sphi 0, %s202
      %s204 = sphi 0, %s202
      %s205 = sphi 0, %s204
      %s219 = sphi 0, %s205
      %s223 = sphi 0, %s223
      %s225 = sphi 0, %s223
      %s226 = sphi 0, %s225
      %s240 = sphi 0, %s226
      %s244 = sphi 0, %s244
      %s246 = sphi 0, %s244
      %s247 = sphi 0, %s246
      %s261 = sphi 0, %s247
      %s265 = sphi 0, %s265
      %s267 = sphi 0, %s265
      %s268 = sphi 0, %s267
      %s282 = sphi 0, %s268
      %s286 = sphi 0, %s286
      %s288 = sphi 0, %s286
      %s289 = sphi 0, %s288
      %s303 = sphi 0, %s289
      %s307 = sphi 0, %s307
      %s309 = sphi 0, %s307
      %s310 = sphi 0, %s309
      %s324 = sphi 0, %s310
      %s328 = sphi 0, %s328
      %s330 = sphi 0, %s328
      %s331 = sphi 0, %s330
      %s345 = sphi 0, %s331
      %s349 = sphi 0, %s349
      %s351 = sphi 0, %s349
      %s352 = sphi 0, %s351
      %s366 = sphi 0, %s352
      %s370 = sphi 0, %s370
      %s372 = sphi 0, %s370
      %s373 = sphi 0, %s372
      %s387 = sphi 0, %s373
      %s391 = sphi 0, %s391
      %s393 = sphi 0, %s391
      %s394 = sphi 0, %s393
      %s408 = sphi 0, %s394
      %s412 = sphi 0, %s412
      %s414 = sphi 0, %s412
      %s415 = sphi 0, %s414
      %s429 = sphi 0, %s415
      %s435 = sphi 0, %s437
      %s438 = sphi 0, %s435
      %s439 = sphi 0, %s438
      %s455 = sphi 0, %s439
    $region4: #{tpu_custom_call.1} parent=1 // loop_header_branch
      %40 = sbr.rel (%p38) target = $region8
    $region5: #{tpu_custom_call.1} parent=1 // loop_body
      %s42 = ssub.s32 %s37, 1
      %s43 = ssub.s32 %s37, 2
      %s44 = sadd.s32 %s37, 1
      %s45 = ssub.s32 %s37, %s44
      %p46 = scmp.eq.s32.totalorder %s45, 0
      %s48 = sadd.s32 %s47, 1
      %s49 = scalar_select %p46, %s47, %s48
      %p52 = pneg %p46
      %p53 = scmp.eq.s32.totalorder %s37, 1
      %p54 = por %p52, %p53
      %p55 = scmp.ne.s32.totalorder %s47, %s50
      %p56 = scmp.eq.s32.totalorder %s37, 0
      %p57 = por %p55, %p56
      %p58 = scmp.ne.s32.totalorder %s47, %s50
      %p59 = scmp.eq.s32.totalorder %s42, 1
      %p60 = por %p58, %p59
      %p61 = scmp.ne.s32.totalorder %s50, %s51
      %p62 = scmp.eq.s32.totalorder %s42, 0
      %p63 = por %p61, %p62
      %p64 = scmp.ne.s32.totalorder %s50, %s51
      %p65 = scmp.eq.s32.totalorder %s43, 1
      %p66 = por %p64, %p65
      %p68 = scmp.ne.s32.totalorder %s51, %s67
      %p69 = scmp.eq.s32.totalorder %s43, 0
      %p70 = por %p68, %p69
      %s71 = ssub.s32 %s37, %s44
      %p72 = scmp.eq.s32.totalorder %s71, 0
      %s74 = sadd.s32 %s73, 1
      %s75 = scalar_select %p72, %s73, %s74
      %p78 = pneg %p72
      %p79 = scmp.eq.s32.totalorder %s37, 1
      %p80 = por %p78, %p79
      %p81 = scmp.ne.s32.totalorder %s73, %s76
      %p82 = scmp.eq.s32.totalorder %s37, 0
      %p83 = por %p81, %p82
      %p84 = scmp.ne.s32.totalorder %s73, %s76
      %p85 = scmp.eq.s32.totalorder %s42, 1
      %p86 = por %p84, %p85
      %p87 = scmp.ne.s32.totalorder %s76, %s77
      %p88 = scmp.eq.s32.totalorder %s42, 0
      %p89 = por %p87, %p88
      %p90 = scmp.ne.s32.totalorder %s76, %s77
      %p91 = scmp.eq.s32.totalorder %s43, 1
      %p92 = por %p90, %p91
      %p94 = scmp.ne.s32.totalorder %s77, %s93
      %p95 = scmp.eq.s32.totalorder %s43, 0
      %p96 = por %p94, %p95
      %s98 = sadd.s32 %s97, 1
      %p101 = scmp.eq.s32.totalorder %s37, 1
      %p102 = scmp.ne.s32.totalorder %s97, %s99
      %p103 = scmp.eq.s32.totalorder %s37, 0
      %p104 = por %p102, %p103
      %p105 = scmp.ne.s32.totalorder %s97, %s99
      %p106 = scmp.eq.s32.totalorder %s42, 1
      %p107 = por %p105, %p106
      %p108 = scmp.ne.s32.totalorder %s99, %s100
      %p109 = scmp.eq.s32.totalorder %s42, 0
      %p110 = por %p108, %p109
      %p111 = scmp.ne.s32.totalorder %s99, %s100
      %p112 = scmp.eq.s32.totalorder %s43, 1
      %p113 = por %p111, %p112
      %p115 = scmp.ne.s32.totalorder %s100, %s114
      %p116 = scmp.eq.s32.totalorder %s43, 0
      %p117 = por %p115, %p116
      %s119 = sadd.s32 %s118, 1
      %p122 = scmp.eq.s32.totalorder %s37, 1
      %p123 = scmp.ne.s32.totalorder %s118, %s120
      %p124 = scmp.eq.s32.totalorder %s37, 0
      %p125 = por %p123, %p124
      %p126 = scmp.ne.s32.totalorder %s118, %s120
      %p127 = scmp.eq.s32.totalorder %s42, 1
      %p128 = por %p126, %p127
      %p129 = scmp.ne.s32.totalorder %s120, %s121
      %p130 = scmp.eq.s32.totalorder %s42, 0
      %p131 = por %p129, %p130
      %p132 = scmp.ne.s32.totalorder %s120, %s121
      %p133 = scmp.eq.s32.totalorder %s43, 1
      %p134 = por %p132, %p133
      %p136 = scmp.ne.s32.totalorder %s121, %s135
      %p137 = scmp.eq.s32.totalorder %s43, 0
      %p138 = por %p136, %p137
      %s140 = sadd.s32 %s139, 1
      %p143 = scmp.eq.s32.totalorder %s37, 1
      %p144 = scmp.ne.s32.totalorder %s139, %s141
      %p145 = scmp.eq.s32.totalorder %s37, 0
      %p146 = por %p144, %p145
      %p147 = scmp.ne.s32.totalorder %s139, %s141
      %p148 = scmp.eq.s32.totalorder %s42, 1
      %p149 = por %p147, %p148
      %p150 = scmp.ne.s32.totalorder %s141, %s142
      %p151 = scmp.eq.s32.totalorder %s42, 0
      %p152 = por %p150, %p151
      %p153 = scmp.ne.s32.totalorder %s141, %s142
      %p154 = scmp.eq.s32.totalorder %s43, 1
      %p155 = por %p153, %p154
      %p157 = scmp.ne.s32.totalorder %s142, %s156
      %p158 = scmp.eq.s32.totalorder %s43, 0
      %p159 = por %p157, %p158
      %s161 = sadd.s32 %s160, 1
      %p164 = scmp.eq.s32.totalorder %s37, 1
      %p165 = scmp.ne.s32.totalorder %s160, %s162
      %p166 = scmp.eq.s32.totalorder %s37, 0
      %p167 = por %p165, %p166
      %p168 = scmp.ne.s32.totalorder %s160, %s162
      %p169 = scmp.eq.s32.totalorder %s42, 1
      %p170 = por %p168, %p169
      %p171 = scmp.ne.s32.totalorder %s162, %s163
      %p172 = scmp.eq.s32.totalorder %s42, 0
      %p173 = por %p171, %p172
      %p174 = scmp.ne.s32.totalorder %s162, %s163
      %p175 = scmp.eq.s32.totalorder %s43, 1
      %p176 = por %p174, %p175
      %p178 = scmp.ne.s32.totalorder %s163, %s177
      %p179 = scmp.eq.s32.totalorder %s43, 0
      %p180 = por %p178, %p179
      %s182 = sadd.s32 %s181, 1
      %p185 = scmp.eq.s32.totalorder %s37, 1
      %p186 = scmp.ne.s32.totalorder %s181, %s183
      %p187 = scmp.eq.s32.totalorder %s37, 0
      %p188 = por %p186, %p187
      %p189 = scmp.ne.s32.totalorder %s181, %s183
      %p190 = scmp.eq.s32.totalorder %s42, 1
      %p191 = por %p189, %p190
      %p192 = scmp.ne.s32.totalorder %s183, %s184
      %p193 = scmp.eq.s32.totalorder %s42, 0
      %p194 = por %p192, %p193
      %p195 = scmp.ne.s32.totalorder %s183, %s184
      %p196 = scmp.eq.s32.totalorder %s43, 1
      %p197 = por %p195, %p196
      %p199 = scmp.ne.s32.totalorder %s184, %s198
      %p200 = scmp.eq.s32.totalorder %s43, 0
      %p201 = por %p199, %p200
      %s203 = sadd.s32 %s202, 1
      %p206 = scmp.eq.s32.totalorder %s37, 1
      %p207 = scmp.ne.s32.totalorder %s202, %s204
      %p208 = scmp.eq.s32.totalorder %s37, 0
      %p209 = por %p207, %p208
      %p210 = scmp.ne.s32.totalorder %s202, %s204
      %p211 = scmp.eq.s32.totalorder %s42, 1
      %p212 = por %p210, %p211
      %p213 = scmp.ne.s32.totalorder %s204, %s205
      %p214 = scmp.eq.s32.totalorder %s42, 0
      %p215 = por %p213, %p214
      %p216 = scmp.ne.s32.totalorder %s204, %s205
      %p217 = scmp.eq.s32.totalorder %s43, 1
      %p218 = por %p216, %p217
      %p220 = scmp.ne.s32.totalorder %s205, %s219
      %p221 = scmp.eq.s32.totalorder %s43, 0
      %p222 = por %p220, %p221
      %s224 = sadd.s32 %s223, 1
      %p227 = scmp.eq.s32.totalorder %s37, 1
      %p228 = scmp.ne.s32.totalorder %s223, %s225
      %p229 = scmp.eq.s32.totalorder %s37, 0
      %p230 = por %p228, %p229
      %p231 = scmp.ne.s32.totalorder %s223, %s225
      %p232 = scmp.eq.s32.totalorder %s42, 1
      %p233 = por %p231, %p232
      %p234 = scmp.ne.s32.totalorder %s225, %s226
      %p235 = scmp.eq.s32.totalorder %s42, 0
      %p236 = por %p234, %p235
      %p237 = scmp.ne.s32.totalorder %s225, %s226
      %p238 = scmp.eq.s32.totalorder %s43, 1
      %p239 = por %p237, %p238
      %p241 = scmp.ne.s32.totalorder %s226, %s240
      %p242 = scmp.eq.s32.totalorder %s43, 0
      %p243 = por %p241, %p242
      %s245 = sadd.s32 %s244, 1
      %p248 = scmp.eq.s32.totalorder %s37, 1
      %p249 = scmp.ne.s32.totalorder %s244, %s246
      %p250 = scmp.eq.s32.totalorder %s37, 0
      %p251 = por %p249, %p250
      %p252 = scmp.ne.s32.totalorder %s244, %s246
      %p253 = scmp.eq.s32.totalorder %s42, 1
      %p254 = por %p252, %p253
      %p255 = scmp.ne.s32.totalorder %s246, %s247
      %p256 = scmp.eq.s32.totalorder %s42, 0
      %p257 = por %p255, %p256
      %p258 = scmp.ne.s32.totalorder %s246, %s247
      %p259 = scmp.eq.s32.totalorder %s43, 1
      %p260 = por %p258, %p259
      %p262 = scmp.ne.s32.totalorder %s247, %s261
      %p263 = scmp.eq.s32.totalorder %s43, 0
      %p264 = por %p262, %p263
      %s266 = sadd.s32 %s265, 1
      %p269 = scmp.eq.s32.totalorder %s37, 1
      %p270 = scmp.ne.s32.totalorder %s265, %s267
      %p271 = scmp.eq.s32.totalorder %s37, 0
      %p272 = por %p270, %p271
      %p273 = scmp.ne.s32.totalorder %s265, %s267
      %p274 = scmp.eq.s32.totalorder %s42, 1
      %p275 = por %p273, %p274
      %p276 = scmp.ne.s32.totalorder %s267, %s268
      %p277 = scmp.eq.s32.totalorder %s42, 0
      %p278 = por %p276, %p277
      %p279 = scmp.ne.s32.totalorder %s267, %s268
      %p280 = scmp.eq.s32.totalorder %s43, 1
      %p281 = por %p279, %p280
      %p283 = scmp.ne.s32.totalorder %s268, %s282
      %p284 = scmp.eq.s32.totalorder %s43, 0
      %p285 = por %p283, %p284
      %s287 = sadd.s32 %s286, 1
      %p290 = scmp.eq.s32.totalorder %s37, 1
      %p291 = scmp.ne.s32.totalorder %s286, %s288
      %p292 = scmp.eq.s32.totalorder %s37, 0
      %p293 = por %p291, %p292
      %p294 = scmp.ne.s32.totalorder %s286, %s288
      %p295 = scmp.eq.s32.totalorder %s42, 1
      %p296 = por %p294, %p295
      %p297 = scmp.ne.s32.totalorder %s288, %s289
      %p298 = scmp.eq.s32.totalorder %s42, 0
      %p299 = por %p297, %p298
      %p300 = scmp.ne.s32.totalorder %s288, %s289
      %p301 = scmp.eq.s32.totalorder %s43, 1
      %p302 = por %p300, %p301
      %p304 = scmp.ne.s32.totalorder %s289, %s303
      %p305 = scmp.eq.s32.totalorder %s43, 0
      %p306 = por %p304, %p305
      %s308 = sadd.s32 %s307, 1
      %p311 = scmp.eq.s32.totalorder %s37, 1
      %p312 = scmp.ne.s32.totalorder %s307, %s309
      %p313 = scmp.eq.s32.totalorder %s37, 0
      %p314 = por %p312, %p313
      %p315 = scmp.ne.s32.totalorder %s307, %s309
      %p316 = scmp.eq.s32.totalorder %s42, 1
      %p317 = por %p315, %p316
      %p318 = scmp.ne.s32.totalorder %s309, %s310
      %p319 = scmp.eq.s32.totalorder %s42, 0
      %p320 = por %p318, %p319
      %p321 = scmp.ne.s32.totalorder %s309, %s310
      %p322 = scmp.eq.s32.totalorder %s43, 1
      %p323 = por %p321, %p322
      %p325 = scmp.ne.s32.totalorder %s310, %s324
      %p326 = scmp.eq.s32.totalorder %s43, 0
      %p327 = por %p325, %p326
      %s329 = sadd.s32 %s328, 1
      %p332 = scmp.eq.s32.totalorder %s37, 1
      %p333 = scmp.ne.s32.totalorder %s328, %s330
      %p334 = scmp.eq.s32.totalorder %s37, 0
      %p335 = por %p333, %p334
      %p336 = scmp.ne.s32.totalorder %s328, %s330
      %p337 = scmp.eq.s32.totalorder %s42, 1
      %p338 = por %p336, %p337
      %p339 = scmp.ne.s32.totalorder %s330, %s331
      %p340 = scmp.eq.s32.totalorder %s42, 0
      %p341 = por %p339, %p340
      %p342 = scmp.ne.s32.totalorder %s330, %s331
      %p343 = scmp.eq.s32.totalorder %s43, 1
      %p344 = por %p342, %p343
      %p346 = scmp.ne.s32.totalorder %s331, %s345
      %p347 = scmp.eq.s32.totalorder %s43, 0
      %p348 = por %p346, %p347
      %s350 = sadd.s32 %s349, 1
      %p353 = scmp.eq.s32.totalorder %s37, 1
      %p354 = scmp.ne.s32.totalorder %s349, %s351
      %p355 = scmp.eq.s32.totalorder %s37, 0
      %p356 = por %p354, %p355
      %p357 = scmp.ne.s32.totalorder %s349, %s351
      %p358 = scmp.eq.s32.totalorder %s42, 1
      %p359 = por %p357, %p358
      %p360 = scmp.ne.s32.totalorder %s351, %s352
      %p361 = scmp.eq.s32.totalorder %s42, 0
      %p362 = por %p360, %p361
      %p363 = scmp.ne.s32.totalorder %s351, %s352
      %p364 = scmp.eq.s32.totalorder %s43, 1
      %p365 = por %p363, %p364
      %p367 = scmp.ne.s32.totalorder %s352, %s366
      %p368 = scmp.eq.s32.totalorder %s43, 0
      %p369 = por %p367, %p368
      %s371 = sadd.s32 %s370, 1
      %p374 = scmp.eq.s32.totalorder %s37, 1
      %p375 = scmp.ne.s32.totalorder %s370, %s372
      %p376 = scmp.eq.s32.totalorder %s37, 0
      %p377 = por %p375, %p376
      %p378 = scmp.ne.s32.totalorder %s370, %s372
      %p379 = scmp.eq.s32.totalorder %s42, 1
      %p380 = por %p378, %p379
      %p381 = scmp.ne.s32.totalorder %s372, %s373
      %p382 = scmp.eq.s32.totalorder %s42, 0
      %p383 = por %p381, %p382
      %p384 = scmp.ne.s32.totalorder %s372, %s373
      %p385 = scmp.eq.s32.totalorder %s43, 1
      %p386 = por %p384, %p385
      %p388 = scmp.ne.s32.totalorder %s373, %s387
      %p389 = scmp.eq.s32.totalorder %s43, 0
      %p390 = por %p388, %p389
      %s392 = sadd.s32 %s391, 1
      %p395 = scmp.eq.s32.totalorder %s37, 1
      %p396 = scmp.ne.s32.totalorder %s391, %s393
      %p397 = scmp.eq.s32.totalorder %s37, 0
      %p398 = por %p396, %p397
      %p399 = scmp.ne.s32.totalorder %s391, %s393
      %p400 = scmp.eq.s32.totalorder %s42, 1
      %p401 = por %p399, %p400
      %p402 = scmp.ne.s32.totalorder %s393, %s394
      %p403 = scmp.eq.s32.totalorder %s42, 0
      %p404 = por %p402, %p403
      %p405 = scmp.ne.s32.totalorder %s393, %s394
      %p406 = scmp.eq.s32.totalorder %s43, 1
      %p407 = por %p405, %p406
      %p409 = scmp.ne.s32.totalorder %s394, %s408
      %p410 = scmp.eq.s32.totalorder %s43, 0
      %p411 = por %p409, %p410
      %s413 = sadd.s32 %s412, 1
      %p416 = scmp.eq.s32.totalorder %s37, 1
      %p417 = scmp.ne.s32.totalorder %s412, %s414
      %p418 = scmp.eq.s32.totalorder %s37, 0
      %p419 = por %p417, %p418
      %p420 = scmp.ne.s32.totalorder %s412, %s414
      %p421 = scmp.eq.s32.totalorder %s42, 1
      %p422 = por %p420, %p421
      %p423 = scmp.ne.s32.totalorder %s414, %s415
      %p424 = scmp.eq.s32.totalorder %s42, 0
      %p425 = por %p423, %p424
      %p426 = scmp.ne.s32.totalorder %s414, %s415
      %p427 = scmp.eq.s32.totalorder %s43, 1
      %p428 = por %p426, %p427
      %p430 = scmp.ne.s32.totalorder %s415, %s429
      %p431 = scmp.eq.s32.totalorder %s43, 0
      %p432 = por %p430, %p431
      %s433 = ssub.s32 %s37, %s44
      %p434 = scmp.eq.s32.totalorder %s433, 0
      %s436 = sadd.s32 %s435, 1
      %s437 = scalar_select %p434, %s435, %s436
      %p440 = pneg %p434
      %p441 = scmp.eq.s32.totalorder %s37, 1
      %p442 = por %p440, %p441
      %p443 = scmp.ne.s32.totalorder %s435, %s438
      %p444 = scmp.eq.s32.totalorder %s37, 0
      %p445 = por %p443, %p444
      %p446 = scmp.ne.s32.totalorder %s435, %s438
      %p447 = scmp.eq.s32.totalorder %s42, 1
      %p448 = por %p446, %p447
      %p449 = scmp.ne.s32.totalorder %s438, %s439
      %p450 = scmp.eq.s32.totalorder %s42, 0
      %p451 = por %p449, %p450
      %p452 = scmp.ne.s32.totalorder %s438, %s439
      %p453 = scmp.eq.s32.totalorder %s43, 1
      %p454 = por %p452, %p453
      %p456 = scmp.ne.s32.totalorder %s439, %s455
      %p457 = scmp.eq.s32.totalorder %s43, 0
      %p458 = por %p456, %p457
      %p459 = scmp.le.s32.totalorder 1, %s37
      %p460 = scmp.lt.s32.totalorder %s37, 3
      %p461 = pnand %p459, %p460
      %p462 = pneg %p461
      // Predicated region
      $region9: #{tpu_custom_call.1} parent=5 // pred_check
        _
      $region10: #{tpu_custom_call.1} parent=5 // pred_check_branch
        %464 = sbr.rel (%p461) target = $region12
      $region11: #{tpu_custom_call.1} parent=5 // pred_region
        %s465 = ssub.s32 %s37, 1
        // Predicated region
        $region13: #{tpu_custom_call.1} parent=11 // pred_check
          %p466 = pneg %p110
        $region14: #{tpu_custom_call.1} parent=11 // pred_check_branch
          %468 = sbr.rel (%p466) target = $region16
        $region15: #{tpu_custom_call.1} parent=11 // pred_region
          %470 = vsyncadd [#allocation6], 0
          %s471 = sshll.u32 %s2, 4
          %s472 = int_to_ptr.hbm [resolvable:$true] %s471
          %s473 = sshll.u32 [#allocation7], 4
          %s474 = int_to_ptr.vmem [resolvable:$true] %s473
          %479 = dma.hbm_to_vmem [thread:$0]  %s472, 256, %s474, [#allocation6], 64, 64, 4
        $region16: #{tpu_custom_call.1} parent=11 // pred_fallthru
          _
        // Predicated region
        $region17: #{tpu_custom_call.1} parent=11 // pred_check
          %p480 = pneg %p131
        $region18: #{tpu_custom_call.1} parent=11 // pred_check_branch
          %482 = sbr.rel (%p480) target = $region20
        $region19: #{tpu_custom_call.1} parent=11 // pred_region
          _
        $region20: #{tpu_custom_call.1} parent=11 // pred_fallthru
          _
        // Predicated region
        $region21: #{tpu_custom_call.1} parent=11 // pred_check
          %p483 = pneg %p152
        $region22: #{tpu_custom_call.1} parent=11 // pred_check_branch
          %485 = sbr.rel (%p483) target = $region24
        $region23: #{tpu_custom_call.1} parent=11 // pred_region
          %487 = vsyncadd [#allocation9], 0
          %s488 = sshll.u32 %s4, 4
          %s489 = int_to_ptr.hbm [resolvable:$true] %s488
          %s490 = sshll.u32 [#allocation8], 4
          %s491 = int_to_ptr.vmem [resolvable:$true] %s490
          %496 = dma.hbm_to_vmem [thread:$0]  %s489, 256, %s491, [#allocation9], 64, 64, 4
        $region24: #{tpu_custom_call.1} parent=11 // pred_fallthru
          _
        // Predicated region
        $region25: #{tpu_custom_call.1} parent=11 // pred_check
          %p497 = pneg %p173
        $region26: #{tpu_custom_call.1} parent=11 // pred_check_branch
          %499 = sbr.rel (%p497) target = $region28
        $region27: #{tpu_custom_call.1} parent=11 // pred_region
          _
        $region28: #{tpu_custom_call.1} parent=11 // pred_fallthru
          _
        // Predicated region
        $region29: #{tpu_custom_call.1} parent=11 // pred_check
          %p500 = pneg %p194
        $region30: #{tpu_custom_call.1} parent=11 // pred_check_branch
          %502 = sbr.rel (%p500) target = $region32
        $region31: #{tpu_custom_call.1} parent=11 // pred_region
          %504 = vsyncadd [#allocation9], 0
          %s505 = sshll.u32 %s6, 4
          %s506 = int_to_ptr.hbm [resolvable:$true] %s505
          %s507 = sshll.u32 [#allocation10], 4
          %s508 = int_to_ptr.vmem [resolvable:$true] %s507
          %513 = dma.hbm_to_vmem [thread:$0]  %s506, 256, %s508, [#allocation9], 64, 64, 4
        $region32: #{tpu_custom_call.1} parent=11 // pred_fallthru
          _
        // Predicated region
        $region33: #{tpu_custom_call.1} parent=11 // pred_check
          %p514 = pneg %p215
        $region34: #{tpu_custom_call.1} parent=11 // pred_check_branch
          %516 = sbr.rel (%p514) target = $region36
        $region35: #{tpu_custom_call.1} parent=11 // pred_region
          %518 = vsyncadd [#allocation12], 0
          %s519 = sshll.u32 %s7, 4
          %s520 = int_to_ptr.hbm [resolvable:$true] %s519
          %s521 = sshll.u32 [#allocation11], 4
          %s522 = int_to_ptr.vmem [resolvable:$true] %s521
          %527 = dma.hbm_to_vmem [thread:$0]  %s520, 256, %s522, [#allocation12], 64, 64, 4
        $region36: #{tpu_custom_call.1} parent=11 // pred_fallthru
          _
        // Predicated region
        $region37: #{tpu_custom_call.1} parent=11 // pred_check
          %p528 = pneg %p236
        $region38: #{tpu_custom_call.1} parent=11 // pred_check_branch
          %530 = sbr.rel (%p528) target = $region40
        $region39: #{tpu_custom_call.1} parent=11 // pred_region
          _
        $region40: #{tpu_custom_call.1} parent=11 // pred_fallthru
          _
        // Predicated region
        $region41: #{tpu_custom_call.1} parent=11 // pred_check
          %p531 = pneg %p257
        $region42: #{tpu_custom_call.1} parent=11 // pred_check_branch
          %533 = sbr.rel (%p531) target = $region44
        $region43: #{tpu_custom_call.1} parent=11 // pred_region
          %535 = vsyncadd [#allocation12], 0
          %s536 = sshll.u32 %s9, 4
          %s537 = int_to_ptr.hbm [resolvable:$true] %s536
          %s538 = sshll.u32 [#allocation13], 4
          %s539 = int_to_ptr.vmem [resolvable:$true] %s538
          %544 = dma.hbm_to_vmem [thread:$0]  %s537, 256, %s539, [#allocation12], 64, 64, 4
        $region44: #{tpu_custom_call.1} parent=11 // pred_fallthru
          _
        // Predicated region
        $region45: #{tpu_custom_call.1} parent=11 // pred_check
          %p545 = pneg %p278
        $region46: #{tpu_custom_call.1} parent=11 // pred_check_branch
          %547 = sbr.rel (%p545) target = $region48
        $region47: #{tpu_custom_call.1} parent=11 // pred_region
          _
        $region48: #{tpu_custom_call.1} parent=11 // pred_fallthru
          _
        // Predicated region
        $region49: #{tpu_custom_call.1} parent=11 // pred_check
          %p548 = pneg %p299
        $region50: #{tpu_custom_call.1} parent=11 // pred_check_branch
          %550 = sbr.rel (%p548) target = $region52
        $region51: #{tpu_custom_call.1} parent=11 // pred_region
          %552 = vsyncadd [#allocation15], 0
          %s553 = sshll.u32 %s11, 4
          %s554 = int_to_ptr.hbm [resolvable:$true] %s553
          %s555 = sshll.u32 [#allocation14], 4
          %s556 = int_to_ptr.vmem [resolvable:$true] %s555
          %561 = dma.hbm_to_vmem [thread:$0]  %s554, 256, %s556, [#allocation15], 64, 64, 4
        $region52: #{tpu_custom_call.1} parent=11 // pred_fallthru
          _
        // Predicated region
        $region53: #{tpu_custom_call.1} parent=11 // pred_check
          %p562 = pneg %p320
        $region54: #{tpu_custom_call.1} parent=11 // pred_check_branch
          %564 = sbr.rel (%p562) target = $region56
        $region55: #{tpu_custom_call.1} parent=11 // pred_region
          %566 = vsyncadd [#allocation15], 0
          %s567 = sshll.u32 %s12, 4
          %s568 = int_to_ptr.hbm [resolvable:$true] %s567
          %s569 = sshll.u32 [#allocation16], 4
          %s570 = int_to_ptr.vmem [resolvable:$true] %s569
          %575 = dma.hbm_to_vmem [thread:$0]  %s568, 256, %s570, [#allocation15], 64, 64, 4
        $region56: #{tpu_custom_call.1} parent=11 // pred_fallthru
          _
        // Predicated region
        $region57: #{tpu_custom_call.1} parent=11 // pred_check
          %p576 = pneg %p341
        $region58: #{tpu_custom_call.1} parent=11 // pred_check_branch
          %578 = sbr.rel (%p576) target = $region60
        $region59: #{tpu_custom_call.1} parent=11 // pred_region
          _
        $region60: #{tpu_custom_call.1} parent=11 // pred_fallthru
          _
        // Predicated region
        $region61: #{tpu_custom_call.1} parent=11 // pred_check
          %p579 = pneg %p362
        $region62: #{tpu_custom_call.1} parent=11 // pred_check_branch
          %581 = sbr.rel (%p579) target = $region64
        $region63: #{tpu_custom_call.1} parent=11 // pred_region
          %583 = vsyncadd [#allocation18], 0
          %s584 = sshll.u32 %s14, 4
          %s585 = int_to_ptr.hbm [resolvable:$true] %s584
          %s586 = sshll.u32 [#allocation17], 4
          %s587 = int_to_ptr.vmem [resolvable:$true] %s586
          %592 = dma.hbm_to_vmem [thread:$0]  %s585, 256, %s587, [#allocation18], 64, 64, 4
        $region64: #{tpu_custom_call.1} parent=11 // pred_fallthru
          _
        // Predicated region
        $region65: #{tpu_custom_call.1} parent=11 // pred_check
          %p593 = pneg %p383
        $region66: #{tpu_custom_call.1} parent=11 // pred_check_branch
          %595 = sbr.rel (%p593) target = $region68
        $region67: #{tpu_custom_call.1} parent=11 // pred_region
          _
        $region68: #{tpu_custom_call.1} parent=11 // pred_fallthru
          _
        // Predicated region
        $region69: #{tpu_custom_call.1} parent=11 // pred_check
          %p596 = pneg %p404
        $region70: #{tpu_custom_call.1} parent=11 // pred_check_branch
          %598 = sbr.rel (%p596) target = $region72
        $region71: #{tpu_custom_call.1} parent=11 // pred_region
          %600 = vsyncadd [#allocation18], 0
          %s601 = sshll.u32 %s16, 4
          %s602 = int_to_ptr.hbm [resolvable:$true] %s601
          %s603 = sshll.u32 [#allocation19], 4
          %s604 = int_to_ptr.vmem [resolvable:$true] %s603
          %609 = dma.hbm_to_vmem [thread:$0]  %s602, 256, %s604, [#allocation18], 64, 64, 4
        $region72: #{tpu_custom_call.1} parent=11 // pred_fallthru
          _
        // Predicated region
        $region73: #{tpu_custom_call.1} parent=11 // pred_check
          %p610 = pneg %p425
        $region74: #{tpu_custom_call.1} parent=11 // pred_check_branch
          %612 = sbr.rel (%p610) target = $region76
        $region75: #{tpu_custom_call.1} parent=11 // pred_region
          _
        $region76: #{tpu_custom_call.1} parent=11 // pred_fallthru
          _
      $region12: #{tpu_custom_call.1} parent=5 // pred_fallthru
        _
      %p613 = scmp.lt.s32.totalorder %s37, 2
      // Predicated region
      $region77: #{tpu_custom_call.1} parent=5 // pred_check
        %p614 = pneg %p613
      $region78: #{tpu_custom_call.1} parent=5 // pred_check_branch
        %616 = sbr.rel (%p614) target = $region80
      $region79: #{tpu_custom_call.1} parent=5 // pred_region
        // Predicated region
        $region81: #{tpu_custom_call.1} parent=79 // pred_check
          %p617 = pneg %p57
        $region82: #{tpu_custom_call.1} parent=79 // pred_check_branch
          %619 = sbr.rel (%p617) target = $region84
        $region83: #{tpu_custom_call.1} parent=79 // pred_region
          %s620 = sand.u32 %s47, 1
          %s621 = scalar_lea.sflag [#allocation3], %s620
          %s622 = sand.u32 %s47, 1
          %s623 = smul.addr %s622, 4
          %s624 = scalar_lea.vmem [#allocation2], %s623
          %626 = vsyncadd %s621, 0
          %s627 = smul.addr %s37, 4
          %s628 = scalar_lea.hbm %s0, %s627
          %s630 = sshll.u32 %s628, 4
          %s631 = int_to_ptr.hbm [resolvable:$true] %s630
          %s632 = sshll.u32 %s624, 4
          %s633 = int_to_ptr.vmem [resolvable:$true] %s632
          %635 = dma.hbm_to_vmem [thread:$0]  %s631, 64, %s633, %s621
        $region84: #{tpu_custom_call.1} parent=79 // pred_fallthru
          _
        // Predicated region
        $region85: #{tpu_custom_call.1} parent=79 // pred_check
          %p636 = pneg %p83
        $region86: #{tpu_custom_call.1} parent=79 // pred_check_branch
          %638 = sbr.rel (%p636) target = $region88
        $region87: #{tpu_custom_call.1} parent=79 // pred_region
          %s639 = sand.u32 %s37, 1
          %s640 = scalar_lea.sflag [#allocation6], %s639
          %s641 = sand.u32 %s73, 1
          %s642 = smul.addr %s641, 4
          %s643 = scalar_lea.vmem [#allocation5], %s642
          %645 = vsyncadd %s640, 0
          %s646 = smul.addr %s37, 4
          %s647 = scalar_lea.hbm %s1, %s646
          %s649 = sshll.u32 %s647, 4
          %s650 = int_to_ptr.hbm [resolvable:$true] %s649
          %s651 = sshll.u32 %s643, 4
          %s652 = int_to_ptr.vmem [resolvable:$true] %s651
          %654 = dma.hbm_to_vmem [thread:$0]  %s650, 64, %s652, %s640
        $region88: #{tpu_custom_call.1} parent=79 // pred_fallthru
          _
      $region80: #{tpu_custom_call.1} parent=5 // pred_fallthru
        _
      %p655 = scmp.le.s32.totalorder 1, %s37
      %p656 = scmp.lt.s32.totalorder %s37, 3
      %p657 = pnand %p655, %p656
      %p658 = pneg %p657
      // Predicated region
      $region89: #{tpu_custom_call.1} parent=5 // pred_check
        _
      $region90: #{tpu_custom_call.1} parent=5 // pred_check_branch
        %660 = sbr.rel (%p657) target = $region92
      $region91: #{tpu_custom_call.1} parent=5 // pred_region
        %s661 = ssub.s32 %s37, 1
        %s662 = sand.u32 %s50, 1
        %s663 = scalar_lea.sflag [#allocation3], %s662
        %s664 = sand.u32 %s50, 1
        %s665 = smul.addr %s664, 4
        %s666 = scalar_lea.vmem [#allocation2], %s665
        // Predicated region
        $region93: #{tpu_custom_call.1} parent=91 // pred_check
          %p667 = pneg %p63
        $region94: #{tpu_custom_call.1} parent=91 // pred_check_branch
          %669 = sbr.rel (%p667) target = $region96
        $region95: #{tpu_custom_call.1} parent=91 // pred_region
          %671 = dma.done %s663, 64
        $region96: #{tpu_custom_call.1} parent=91 // pred_fallthru
          _
        %s672 = sand.u32 %s42, 1
        %s673 = scalar_lea.sflag [#allocation6], %s672
        %s674 = sand.u32 %s76, 1
        %s675 = smul.addr %s674, 4
        %s676 = scalar_lea.vmem [#allocation5], %s675
        // Predicated region
        $region97: #{tpu_custom_call.1} parent=91 // pred_check
          %p677 = pneg %p89
        $region98: #{tpu_custom_call.1} parent=91 // pred_check_branch
          %679 = sbr.rel (%p677) target = $region100
        $region99: #{tpu_custom_call.1} parent=91 // pred_region
          %681 = dma.done %s673, 64
        $region100: #{tpu_custom_call.1} parent=91 // pred_fallthru
          _
        // Predicated region
        $region101: #{tpu_custom_call.1} parent=91 // pred_check
          %p682 = pneg %p110
        $region102: #{tpu_custom_call.1} parent=91 // pred_check_branch
          %684 = sbr.rel (%p682) target = $region104
        $region103: #{tpu_custom_call.1} parent=91 // pred_region
          %686 = dma.done [#allocation6], 256
        $region104: #{tpu_custom_call.1} parent=91 // pred_fallthru
          _
        // Predicated region
        $region105: #{tpu_custom_call.1} parent=91 // pred_check
          %p687 = pneg %p152
        $region106: #{tpu_custom_call.1} parent=91 // pred_check_branch
          %689 = sbr.rel (%p687) target = $region108
        $region107: #{tpu_custom_call.1} parent=91 // pred_region
          %691 = dma.done [#allocation9], 256
        $region108: #{tpu_custom_call.1} parent=91 // pred_fallthru
          _
        // Predicated region
        $region109: #{tpu_custom_call.1} parent=91 // pred_check
          %p692 = pneg %p194
        $region110: #{tpu_custom_call.1} parent=91 // pred_check_branch
          %694 = sbr.rel (%p692) target = $region112
        $region111: #{tpu_custom_call.1} parent=91 // pred_region
          %696 = dma.done [#allocation9], 256
        $region112: #{tpu_custom_call.1} parent=91 // pred_fallthru
          _
        // Predicated region
        $region113: #{tpu_custom_call.1} parent=91 // pred_check
          %p697 = pneg %p215
        $region114: #{tpu_custom_call.1} parent=91 // pred_check_branch
          %699 = sbr.rel (%p697) target = $region116
        $region115: #{tpu_custom_call.1} parent=91 // pred_region
          %701 = dma.done [#allocation12], 256
        $region116: #{tpu_custom_call.1} parent=91 // pred_fallthru
          _
        // Predicated region
        $region117: #{tpu_custom_call.1} parent=91 // pred_check
          %p702 = pneg %p257
        $region118: #{tpu_custom_call.1} parent=91 // pred_check_branch
          %704 = sbr.rel (%p702) target = $region120
        $region119: #{tpu_custom_call.1} parent=91 // pred_region
          %706 = dma.done [#allocation12], 256
        $region120: #{tpu_custom_call.1} parent=91 // pred_fallthru
          _
        // Predicated region
        $region121: #{tpu_custom_call.1} parent=91 // pred_check
          %p707 = pneg %p299
        $region122: #{tpu_custom_call.1} parent=91 // pred_check_branch
          %709 = sbr.rel (%p707) target = $region124
        $region123: #{tpu_custom_call.1} parent=91 // pred_region
          %711 = dma.done [#allocation15], 256
        $region124: #{tpu_custom_call.1} parent=91 // pred_fallthru
          _
        // Predicated region
        $region125: #{tpu_custom_call.1} parent=91 // pred_check
          %p712 = pneg %p320
        $region126: #{tpu_custom_call.1} parent=91 // pred_check_branch
          %714 = sbr.rel (%p712) target = $region128
        $region127: #{tpu_custom_call.1} parent=91 // pred_region
          %716 = dma.done [#allocation15], 256
        $region128: #{tpu_custom_call.1} parent=91 // pred_fallthru
          _
        // Predicated region
        $region129: #{tpu_custom_call.1} parent=91 // pred_check
          %p717 = pneg %p362
        $region130: #{tpu_custom_call.1} parent=91 // pred_check_branch
          %719 = sbr.rel (%p717) target = $region132
        $region131: #{tpu_custom_call.1} parent=91 // pred_region
          %721 = dma.done [#allocation18], 256
        $region132: #{tpu_custom_call.1} parent=91 // pred_fallthru
          _
        // Predicated region
        $region133: #{tpu_custom_call.1} parent=91 // pred_check
          %p722 = pneg %p404
        $region134: #{tpu_custom_call.1} parent=91 // pred_check_branch
          %724 = sbr.rel (%p722) target = $region136
        $region135: #{tpu_custom_call.1} parent=91 // pred_region
          %726 = dma.done [#allocation18], 256
        $region136: #{tpu_custom_call.1} parent=91 // pred_fallthru
          _
        %s727 = sand.u32 %s50, 1
        %s728 = scalar_lea.sflag [#allocation3], %s727
        %s729 = sand.u32 %s50, 1
        %s730 = smul.addr %s729, 4
        %s731 = scalar_lea.vmem [#allocation2], %s730
        %p732 = pneg %p63
        %p733 = pneg %p60
        %s734 = sand.u32 %s42, 1
        %s735 = scalar_lea.sflag [#allocation6], %s734
        %s736 = sand.u32 %s76, 1
        %s737 = smul.addr %s736, 4
        %s738 = scalar_lea.vmem [#allocation5], %s737
        %p739 = pneg %p89
        %p740 = pneg %p86
        %p741 = pneg %p110
        %p742 = pneg %p107
        %p743 = pneg %p131
        %p744 = pneg %p128
        %p745 = pneg %p152
        %p746 = pneg %p149
        %p747 = pneg %p173
        %p748 = pneg %p170
        %p749 = pneg %p194
        %p750 = pneg %p191
        %p751 = pneg %p215
        %p752 = pneg %p212
        %p753 = pneg %p236
        %p754 = pneg %p233
        %p755 = pneg %p257
        %p756 = pneg %p254
        %p757 = pneg %p278
        %p758 = pneg %p275
        %p759 = pneg %p299
        %p760 = pneg %p296
        %p761 = pneg %p320
        %p762 = pneg %p317
        %p763 = pneg %p341
        %p764 = pneg %p338
        %p765 = pneg %p362
        %p766 = pneg %p359
        %p767 = pneg %p383
        %p768 = pneg %p380
        %p769 = pneg %p404
        %p770 = pneg %p401
        %p771 = pneg %p425
        %p772 = pneg %p422
        %p773 = pneg %p451
        %p774 = pneg %p448
        %s775 = sand.u32 %s438, 1
        %s776 = scalar_lea.sflag [#allocation4], %s775
        %s777 = sand.u32 %s438, 1
        %s778 = scalar_lea.vmem [#allocation20], %s777
        %v780 = vld [vmem:[%s666] sm:$0xf]
        %v781 = vld [vmem:[%s676] sm:$0xf]
        %v782 = vunpack.c.l.bf16 %v780
        %v783 = vunpack.c.l.bf16 %v781
        %v784 = vld [vmem:[#allocation7] sm:$0xf]
        %v785 = vld [vmem:[#allocation7 + $0x4] sm:$0xf]
        %v786 = vld [vmem:[#allocation7 + $0x8] sm:$0xf]
        %v787 = vld [vmem:[#allocation7 + $0xc] sm:$0xf]
        %v788 = vld [vmem:[%s3] sm:$0x1]
        %v789 = vld [vmem:[#allocation8] sm:$0xf]
        %v790 = vld [vmem:[#allocation8 + $0x4] sm:$0xf]
        %v791 = vld [vmem:[#allocation8 + $0x8] sm:$0xf]
        %v792 = vld [vmem:[#allocation8 + $0xc] sm:$0xf]
        %v793 = vld [vmem:[%s5] sm:$0x1]
        %v794 = vld [vmem:[#allocation10] sm:$0xf]
        %v795 = vld [vmem:[#allocation10 + $0x4] sm:$0xf]
        %v796 = vld [vmem:[#allocation10 + $0x8] sm:$0xf]
        %v797 = vld [vmem:[#allocation10 + $0xc] sm:$0xf]
        %v798 = vld [vmem:[#allocation11] sm:$0xf]
        %v799 = vld [vmem:[#allocation11 + $0x4] sm:$0xf]
        %v800 = vld [vmem:[#allocation11 + $0x8] sm:$0xf]
        %v801 = vld [vmem:[#allocation11 + $0xc] sm:$0xf]
        %v802 = vld [vmem:[%s8] sm:$0x1]
        %v803 = vld [vmem:[#allocation13] sm:$0xf]
        %v804 = vld [vmem:[#allocation13 + $0x4] sm:$0xf]
        %v805 = vld [vmem:[#allocation13 + $0x8] sm:$0xf]
        %v806 = vld [vmem:[#allocation13 + $0xc] sm:$0xf]
        %v807 = vld [vmem:[%s10] sm:$0x1]
        %v808 = vld [vmem:[#allocation14] sm:$0xf]
        %v809 = vld [vmem:[#allocation14 + $0x4] sm:$0xf]
        %v810 = vld [vmem:[#allocation14 + $0x8] sm:$0xf]
        %v811 = vld [vmem:[#allocation14 + $0xc] sm:$0xf]
        %v812 = vld [vmem:[#allocation16] sm:$0xf]
        %v813 = vld [vmem:[#allocation16 + $0x4] sm:$0xf]
        %v814 = vld [vmem:[#allocation16 + $0x8] sm:$0xf]
        %v815 = vld [vmem:[#allocation16 + $0xc] sm:$0xf]
        %v816 = vld [vmem:[%s13] sm:$0x1]
        %v817 = vld [vmem:[#allocation17] sm:$0xf]
        %v818 = vld [vmem:[#allocation17 + $0x4] sm:$0xf]
        %v819 = vld [vmem:[#allocation17 + $0x8] sm:$0xf]
        %v820 = vld [vmem:[#allocation17 + $0xc] sm:$0xf]
        %v821 = vld [vmem:[%s15] sm:$0x1]
        %v822 = vld [vmem:[#allocation19] sm:$0xf]
        %v823 = vld [vmem:[#allocation19 + $0x4] sm:$0xf]
        %v824 = vld [vmem:[#allocation19 + $0x8] sm:$0xf]
        %v825 = vld [vmem:[#allocation19 + $0xc] sm:$0xf]
        %v826 = vld [vmem:[%s17] sm:$0x1]
        %v831 = vunpack.c.l.b16 %v784
        %v832 = vunpack.c.l.b16 %v785
        %v833 = vunpack.c.l.b16 %v786
        %v834 = vunpack.c.l.b16 %v787
        %v835 = vpack.c.b16 %v832, %v831
        %v836 = vpack.c.b16 %v834, %v833
        %vm839 = vcmask 261120
        %v841 = vsel %vm839, %v780, 0
        %843 = vmatpush.bf16.msra.mxu0 0
        %844 = vmatpush.bf16.msra.mxu0 0
        %845 = vmatpush.bf16.msra.mxu0 0
        %846 = vmatpush.bf16.msra.mxu0 0
        %847 = vmatpush.bf16.msra.mxu0 0
        %848 = vmatpush.bf16.msra.mxu0 0
        %849 = vmatpush.bf16.msra.mxu0 %v836
        %850 = vmatpush.bf16.msra.mxu0 %v835
        %851 = vmatmul.bf16.gmra.mxu0 %v841
        %v852 = vpop.f32.mrf.mxu0
        %v853 = vadd.f32 0.0, %v852
        %v854 = vpop.f32.mrf.mxu0
        %855 = vdwg.mxu0
        %v857 = vperm.slane %v788, 0
        %v859 = vadd.f32 %v857, %v853
        %v860 = vmax.f32 %v859, 0.0
        %v861 = vpack.c.bf16 %v860, %v860
        %v863 = vperm.slane %v793, 0
        %v869 = vunpack.c.l.b16 %v789
        %v870 = vunpack.c.l.b16 %v790
        %v871 = vunpack.c.l.b16 %v791
        %v872 = vunpack.c.l.b16 %v792
        %v873 = vpack.c.b16 %v870, %v869
        %v874 = vpack.c.b16 %v872, %v871
        %v878 = vsel %vm839, %v861, 0
        %880 = vmatpush.bf16.msra.mxu0 0
        %881 = vmatpush.bf16.msra.mxu0 0
        %882 = vmatpush.bf16.msra.mxu0 0
        %883 = vmatpush.bf16.msra.mxu0 0
        %884 = vmatpush.bf16.msra.mxu0 0
        %885 = vmatpush.bf16.msra.mxu0 0
        %886 = vmatpush.bf16.msra.mxu0 %v874
        %887 = vmatpush.bf16.msra.mxu0 %v873
        %888 = vmatmul.bf16.gmra.mxu0 %v878
        %v889 = vpop.f32.mrf.mxu0
        %v890 = vadd.f32 %v863, %v889
        %v891 = vpop.f32.mrf.mxu0
        %892 = vdwg.mxu0
        %v893 = vmax.f32 %v890, 0.0
        %v894 = vpack.c.bf16 %v893, %v893
        %v896 = vsel %vm839, %v781, 0
        %898 = vmatpush.bf16.msra.mxu0 0
        %899 = vmatpush.bf16.msra.mxu0 0
        %900 = vmatpush.bf16.msra.mxu0 0
        %901 = vmatpush.bf16.msra.mxu0 0
        %902 = vmatpush.bf16.msra.mxu0 0
        %903 = vmatpush.bf16.msra.mxu0 0
        %904 = vmatpush.bf16.msra.mxu0 %v836
        %905 = vmatpush.bf16.msra.mxu0 %v835
        %906 = vmatmul.bf16.gmra.mxu0 %v896
        %v907 = vpop.f32.mrf.mxu0
        %v908 = vadd.f32 0.0, %v907
        %v909 = vpop.f32.mrf.mxu0
        %910 = vdwg.mxu0
        %v911 = vadd.f32 %v857, %v908
        %v912 = vmax.f32 %v911, 0.0
        %v913 = vpack.c.bf16 %v912, %v912
        %v915 = vsel %vm839, %v913, 0
        %917 = vmatpush.bf16.msra.mxu0 0
        %918 = vmatpush.bf16.msra.mxu0 0
        %919 = vmatpush.bf16.msra.mxu0 0
        %920 = vmatpush.bf16.msra.mxu0 0
        %921 = vmatpush.bf16.msra.mxu0 0
        %922 = vmatpush.bf16.msra.mxu0 0
        %923 = vmatpush.bf16.msra.mxu0 %v874
        %924 = vmatpush.bf16.msra.mxu0 %v873
        %925 = vmatmul.bf16.gmra.mxu0 %v915
        %v926 = vpop.f32.mrf.mxu0
        %v927 = vadd.f32 %v863, %v926
        %v928 = vpop.f32.mrf.mxu0
        %929 = vdwg.mxu0
        %v930 = vmax.f32 %v927, 0.0
        %v931 = vpack.c.bf16 %v930, %v930
        %v933 = vsel %vm839, %v894, 0
        %v936 = vsel %vm839, %v931, 0
        %938 = vmatpush.bf16.xpose.msra.mxu0 0
        %939 = vmatpush.bf16.xpose.msra.mxu0 0
        %940 = vmatpush.bf16.xpose.msra.mxu0 0
        %941 = vmatpush.bf16.xpose.msra.mxu0 0
        %942 = vmatpush.bf16.xpose.msra.mxu0 0
        %943 = vmatpush.bf16.xpose.msra.mxu0 0
        %944 = vmatpush.bf16.xpose.msra.mxu0 0
        %945 = vmatpush.bf16.xpose.msra.mxu0 %v936
        %946 = vmatmul.bf16.gmra.mxu0 %v933
        %v947 = vpop.f32.mrf.mxu0
        %v948 = vadd.f32 0.0, %v947
        %v949 = vpop.f32.mrf.mxu0
        %950 = vdwg.mxu0
        %951 = vmatpush.bf16.xpose.msra.mxu0 0
        %952 = vmatpush.bf16.xpose.msra.mxu0 0
        %953 = vmatpush.bf16.xpose.msra.mxu0 0
        %954 = vmatpush.bf16.xpose.msra.mxu0 0
        %955 = vmatpush.bf16.xpose.msra.mxu0 0
        %956 = vmatpush.bf16.xpose.msra.mxu0 0
        %957 = vmatpush.bf16.xpose.msra.mxu0 0
        %958 = vmatpush.bf16.xpose.msra.mxu0 %v933
        %959 = vmatmul.bf16.gmra.mxu0 %v936
        %v960 = vpop.f32.mrf.mxu0
        %v961 = vadd.f32 0.0, %v960
        %v962 = vpop.f32.mrf.mxu0
        %963 = vdwg.mxu0
        %vm964 = vcmask 64512
        %v965 = vsel %vm964, %v948, -inf
        %966 = vmax.xlane.f32.xlu0 %v965
        %v967 = vpop.xlane.xlu0 %966
        %v968 = vsub.f32 %v948, %v967
        %v969 = vmul.f32 %v968, 1.442695
        %v970 = vpow.pop %v969
        %v971 = vsel %vm964, %v970, 0.0
        %972 = vadd.xlane.f32.xlu0 %v971
        %v973 = vpop.xlane.xlu0 %972
        %v974 = vrcp.pop %v973
        %v975 = vmul.f32 %v970, %v974
        %v976 = vsel %vm964, %v961, -inf
        %977 = vmax.xlane.f32.xlu0 %v976
        %v978 = vpop.xlane.xlu0 %977
        %v979 = vsub.f32 %v961, %v978
        %v980 = vmul.f32 %v979, 1.442695
        %v981 = vpow.pop %v980
        %v982 = vsel %vm964, %v981, 0.0
        %983 = vadd.xlane.f32.xlu0 %v982
        %v984 = vpop.xlane.xlu0 %983
        %v985 = vrcp.pop %v984
        %v986 = vmul.f32 %v981, %v985
        %988 = vset.pattern.permute.xlu0 0
        %989 = vperm.xlu0 %988, %v975
        %v990 = vpop.permute.xlu0 %989
        %v992 = vperm.slane %v783, 0
        %v993 = vmul.f32 %v990, %v992
        %994 = vset.pattern.permute.xlu0 1
        %995 = vperm.xlu0 %994, %v975
        %v996 = vpop.permute.xlu0 %995
        %v998 = vperm.slane %v783, 1
        %v999 = vmul.f32 %v996, %v998
        %v1000 = vadd.f32 %v993, %v999
        %1001 = vset.pattern.permute.xlu0 2
        %1002 = vperm.xlu0 %1001, %v975
        %v1003 = vpop.permute.xlu0 %1002
        %v1005 = vperm.slane %v783, 2
        %v1006 = vmul.f32 %v1003, %v1005
        %v1007 = vadd.f32 %v1000, %v1006
        %1008 = vset.pattern.permute.xlu0 3
        %1009 = vperm.xlu0 %1008, %v975
        %v1010 = vpop.permute.xlu0 %1009
        %v1012 = vperm.slane %v783, 3
        %v1013 = vmul.f32 %v1010, %v1012
        %v1014 = vadd.f32 %v1007, %v1013
        %1015 = vset.pattern.permute.xlu0 4
        %1016 = vperm.xlu0 %1015, %v975
        %v1017 = vpop.permute.xlu0 %1016
        %v1019 = vperm.slane %v783, 4
        %v1020 = vmul.f32 %v1017, %v1019
        %v1021 = vadd.f32 %v1014, %v1020
        %1022 = vset.pattern.permute.xlu0 5
        %1023 = vperm.xlu0 %1022, %v975
        %v1024 = vpop.permute.xlu0 %1023
        %v1026 = vperm.slane %v783, 5
        %v1027 = vmul.f32 %v1024, %v1026
        %v1028 = vadd.f32 %v1021, %v1027
        %1029 = vset.pattern.permute.xlu0 6
        %1030 = vperm.xlu0 %1029, %v975
        %v1031 = vpop.permute.xlu0 %1030
        %v1033 = vperm.slane %v783, 6
        %v1034 = vmul.f32 %v1031, %v1033
        %v1035 = vadd.f32 %v1028, %v1034
        %1036 = vset.pattern.permute.xlu0 7
        %1037 = vperm.xlu0 %1036, %v975
        %v1038 = vpop.permute.xlu0 %1037
        %v1040 = vperm.slane %v783, 7
        %v1041 = vmul.f32 %v1038, %v1040
        %v1042 = vadd.f32 %v1035, %v1041
        %1044 = vset.pattern.permute.xlu0 0
        %1045 = vperm.xlu0 %1044, %v986
        %v1046 = vpop.permute.xlu0 %1045
        %v1048 = vperm.slane %v782, 0
        %v1049 = vmul.f32 %v1046, %v1048
        %1050 = vset.pattern.permute.xlu0 1
        %1051 = vperm.xlu0 %1050, %v986
        %v1052 = vpop.permute.xlu0 %1051
        %v1054 = vperm.slane %v782, 1
        %v1055 = vmul.f32 %v1052, %v1054
        %v1056 = vadd.f32 %v1049, %v1055
        %1057 = vset.pattern.permute.xlu0 2
        %1058 = vperm.xlu0 %1057, %v986
        %v1059 = vpop.permute.xlu0 %1058
        %v1061 = vperm.slane %v782, 2
        %v1062 = vmul.f32 %v1059, %v1061
        %v1063 = vadd.f32 %v1056, %v1062
        %1064 = vset.pattern.permute.xlu0 3
        %1065 = vperm.xlu0 %1064, %v986
        %v1066 = vpop.permute.xlu0 %1065
        %v1068 = vperm.slane %v782, 3
        %v1069 = vmul.f32 %v1066, %v1068
        %v1070 = vadd.f32 %v1063, %v1069
        %1071 = vset.pattern.permute.xlu0 4
        %1072 = vperm.xlu0 %1071, %v986
        %v1073 = vpop.permute.xlu0 %1072
        %v1075 = vperm.slane %v782, 4
        %v1076 = vmul.f32 %v1073, %v1075
        %v1077 = vadd.f32 %v1070, %v1076
        %1078 = vset.pattern.permute.xlu0 5
        %1079 = vperm.xlu0 %1078, %v986
        %v1080 = vpop.permute.xlu0 %1079
        %v1082 = vperm.slane %v782, 5
        %v1083 = vmul.f32 %v1080, %v1082
        %v1084 = vadd.f32 %v1077, %v1083
        %1085 = vset.pattern.permute.xlu0 6
        %1086 = vperm.xlu0 %1085, %v986
        %v1087 = vpop.permute.xlu0 %1086
        %v1089 = vperm.slane %v782, 6
        %v1090 = vmul.f32 %v1087, %v1089
        %v1091 = vadd.f32 %v1084, %v1090
        %1092 = vset.pattern.permute.xlu0 7
        %1093 = vperm.xlu0 %1092, %v986
        %v1094 = vpop.permute.xlu0 %1093
        %v1096 = vperm.slane %v782, 7
        %v1097 = vmul.f32 %v1094, %v1096
        %v1098 = vadd.f32 %v1091, %v1097
        %v1099 = vpack.c.bf16 %v1042, %v1042
        %v1104 = vunpack.c.l.b16 %v794
        %v1105 = vunpack.c.l.b16 %v795
        %v1106 = vunpack.c.l.b16 %v796
        %v1107 = vunpack.c.l.b16 %v797
        %v1108 = vpack.c.b16 %v1105, %v1104
        %v1109 = vpack.c.b16 %v1107, %v1106
        %1112 = vmatpush.bf16.msra.mxu0 0
        %1113 = vmatpush.bf16.msra.mxu0 0
        %1114 = vmatpush.bf16.msra.mxu0 0
        %1115 = vmatpush.bf16.msra.mxu0 0
        %1116 = vmatpush.bf16.msra.mxu0 0
        %1117 = vmatpush.bf16.msra.mxu0 0
        %1118 = vmatpush.bf16.msra.mxu0 %v1109
        %1119 = vmatpush.bf16.msra.mxu0 %v1108
        %1120 = vmatmul.bf16.gmra.mxu0 %v841
        %v1121 = vpop.f32.mrf.mxu0
        %v1122 = vadd.f32 0.0, %v1121
        %v1123 = vpop.f32.mrf.mxu0
        %1124 = vdwg.mxu0
        %v1126 = vperm.slane %v802, 0
        %v1128 = vadd.f32 %v1126, %v1122
        %v1133 = vunpack.c.l.b16 %v798
        %v1134 = vunpack.c.l.b16 %v799
        %v1135 = vunpack.c.l.b16 %v800
        %v1136 = vunpack.c.l.b16 %v801
        %v1137 = vpack.c.b16 %v1134, %v1133
        %v1138 = vpack.c.b16 %v1136, %v1135
        %v1142 = vsel %vm839, %v1099, 0
        %1144 = vmatpush.bf16.msra.mxu0 0
        %1145 = vmatpush.bf16.msra.mxu0 0
        %1146 = vmatpush.bf16.msra.mxu0 0
        %1147 = vmatpush.bf16.msra.mxu0 0
        %1148 = vmatpush.bf16.msra.mxu0 0
        %1149 = vmatpush.bf16.msra.mxu0 0
        %1150 = vmatpush.bf16.msra.mxu0 %v1138
        %1151 = vmatpush.bf16.msra.mxu0 %v1137
        %1152 = vmatmul.bf16.gmra.mxu0 %v1142
        %v1153 = vpop.f32.mrf.mxu0
        %v1154 = vadd.f32 0.0, %v1153
        %v1155 = vpop.f32.mrf.mxu0
        %1156 = vdwg.mxu0
        %v1157 = vadd.f32 %v1128, %v1154
        %v1158 = vmax.f32 %v1157, 0.0
        %v1159 = vpack.c.bf16 %v1158, %v1158
        %v1161 = vperm.slane %v807, 0
        %v1167 = vunpack.c.l.b16 %v803
        %v1168 = vunpack.c.l.b16 %v804
        %v1169 = vunpack.c.l.b16 %v805
        %v1170 = vunpack.c.l.b16 %v806
        %v1171 = vpack.c.b16 %v1168, %v1167
        %v1172 = vpack.c.b16 %v1170, %v1169
        %v1176 = vsel %vm839, %v1159, 0
        %1178 = vmatpush.bf16.msra.mxu0 0
        %1179 = vmatpush.bf16.msra.mxu0 0
        %1180 = vmatpush.bf16.msra.mxu0 0
        %1181 = vmatpush.bf16.msra.mxu0 0
        %1182 = vmatpush.bf16.msra.mxu0 0
        %1183 = vmatpush.bf16.msra.mxu0 0
        %1184 = vmatpush.bf16.msra.mxu0 %v1172
        %1185 = vmatpush.bf16.msra.mxu0 %v1171
        %1186 = vmatmul.bf16.gmra.mxu0 %v1176
        %v1187 = vpop.f32.mrf.mxu0
        %v1188 = vadd.f32 %v1161, %v1187
        %v1189 = vpop.f32.mrf.mxu0
        %1190 = vdwg.mxu0
        %v1191 = vmax.f32 %v1188, 0.0
        %v1192 = vpack.c.bf16 %v1098, %v1098
        %1193 = vmatpush.bf16.msra.mxu0 0
        %1194 = vmatpush.bf16.msra.mxu0 0
        %1195 = vmatpush.bf16.msra.mxu0 0
        %1196 = vmatpush.bf16.msra.mxu0 0
        %1197 = vmatpush.bf16.msra.mxu0 0
        %1198 = vmatpush.bf16.msra.mxu0 0
        %1199 = vmatpush.bf16.msra.mxu0 %v1109
        %1200 = vmatpush.bf16.msra.mxu0 %v1108
        %1201 = vmatmul.bf16.gmra.mxu0 %v896
        %v1202 = vpop.f32.mrf.mxu0
        %v1203 = vadd.f32 0.0, %v1202
        %v1204 = vpop.f32.mrf.mxu0
        %1205 = vdwg.mxu0
        %v1206 = vadd.f32 %v1126, %v1203
        %v1208 = vsel %vm839, %v1192, 0
        %1210 = vmatpush.bf16.msra.mxu0 0
        %1211 = vmatpush.bf16.msra.mxu0 0
        %1212 = vmatpush.bf16.msra.mxu0 0
        %1213 = vmatpush.bf16.msra.mxu0 0
        %1214 = vmatpush.bf16.msra.mxu0 0
        %1215 = vmatpush.bf16.msra.mxu0 0
        %1216 = vmatpush.bf16.msra.mxu0 %v1138
        %1217 = vmatpush.bf16.msra.mxu0 %v1137
        %1218 = vmatmul.bf16.gmra.mxu0 %v1208
        %v1219 = vpop.f32.mrf.mxu0
        %v1220 = vadd.f32 0.0, %v1219
        %v1221 = vpop.f32.mrf.mxu0
        %1222 = vdwg.mxu0
        %v1223 = vadd.f32 %v1206, %v1220
        %v1224 = vmax.f32 %v1223, 0.0
        %v1225 = vpack.c.bf16 %v1224, %v1224
        %v1227 = vsel %vm839, %v1225, 0
        %1229 = vmatpush.bf16.msra.mxu0 0
        %1230 = vmatpush.bf16.msra.mxu0 0
        %1231 = vmatpush.bf16.msra.mxu0 0
        %1232 = vmatpush.bf16.msra.mxu0 0
        %1233 = vmatpush.bf16.msra.mxu0 0
        %1234 = vmatpush.bf16.msra.mxu0 0
        %1235 = vmatpush.bf16.msra.mxu0 %v1172
        %1236 = vmatpush.bf16.msra.mxu0 %v1171
        %1237 = vmatmul.bf16.gmra.mxu0 %v1227
        %v1238 = vpop.f32.mrf.mxu0
        %v1239 = vadd.f32 %v1161, %v1238
        %v1240 = vpop.f32.mrf.mxu0
        %1241 = vdwg.mxu0
        %v1242 = vmax.f32 %v1239, 0.0
        %v1243 = vsel %vm839, %v1191, 0.0
        %v1244 = vrot.slane %v1243, 4
        %v1245 = vadd.f32 %v1243, %v1244
        %v1246 = vrot.slane %v1245, 2
        %v1247 = vadd.f32 %v1245, %v1246
        %v1248 = vrot.slane %v1247, 1
        %v1249 = vadd.f32 %v1247, %v1248
        %v1250 = vsel %vm839, %v1242, 0.0
        %v1251 = vrot.slane %v1250, 4
        %v1252 = vadd.f32 %v1250, %v1251
        %v1253 = vrot.slane %v1252, 2
        %v1254 = vadd.f32 %v1252, %v1253
        %v1255 = vrot.slane %v1254, 1
        %v1256 = vadd.f32 %v1254, %v1255
        %v1257 = vpack.c.bf16 %v1249, %v1249
        %v1258 = vpack.c.bf16 %v1256, %v1256
        %v1263 = vunpack.c.l.b16 %v808
        %v1264 = vunpack.c.l.b16 %v809
        %v1265 = vunpack.c.l.b16 %v810
        %v1266 = vunpack.c.l.b16 %v811
        %v1267 = vpack.c.b16 %v1264, %v1263
        %v1268 = vpack.c.b16 %v1266, %v1265
        %v1272 = vsel %vm839, %v1257, 0
        %1274 = vmatpush.bf16.msra.mxu0 0
        %1275 = vmatpush.bf16.msra.mxu0 0
        %1276 = vmatpush.bf16.msra.mxu0 0
        %1277 = vmatpush.bf16.msra.mxu0 0
        %1278 = vmatpush.bf16.msra.mxu0 0
        %1279 = vmatpush.bf16.msra.mxu0 0
        %1280 = vmatpush.bf16.msra.mxu0 %v1268
        %1281 = vmatpush.bf16.msra.mxu0 %v1267
        %1282 = vmatmul.bf16.gmra.mxu0 %v1272
        %v1283 = vpop.f32.mrf.mxu0
        %v1284 = vadd.f32 0.0, %v1283
        %v1285 = vpop.f32.mrf.mxu0
        %1286 = vdwg.mxu0
        %v1287 = vadd.f32 %v816, %v1284
        %v1292 = vunpack.c.l.b16 %v812
        %v1293 = vunpack.c.l.b16 %v813
        %v1294 = vunpack.c.l.b16 %v814
        %v1295 = vunpack.c.l.b16 %v815
        %v1296 = vpack.c.b16 %v1293, %v1292
        %v1297 = vpack.c.b16 %v1295, %v1294
        %v1301 = vsel %vm839, %v1258, 0
        %1303 = vmatpush.bf16.msra.mxu0 0
        %1304 = vmatpush.bf16.msra.mxu0 0
        %1305 = vmatpush.bf16.msra.mxu0 0
        %1306 = vmatpush.bf16.msra.mxu0 0
        %1307 = vmatpush.bf16.msra.mxu0 0
        %1308 = vmatpush.bf16.msra.mxu0 0
        %1309 = vmatpush.bf16.msra.mxu0 %v1297
        %1310 = vmatpush.bf16.msra.mxu0 %v1296
        %1311 = vmatmul.bf16.gmra.mxu0 %v1301
        %v1312 = vpop.f32.mrf.mxu0
        %v1313 = vadd.f32 0.0, %v1312
        %v1314 = vpop.f32.mrf.mxu0
        %1315 = vdwg.mxu0
        %v1316 = vadd.f32 %v1287, %v1313
        %v1317 = vmax.f32 %v1316, 0.0
        %v1318 = vpack.c.bf16 %v1317, %v1317
        %v1323 = vunpack.c.l.b16 %v817
        %v1324 = vunpack.c.l.b16 %v818
        %v1325 = vunpack.c.l.b16 %v819
        %v1326 = vunpack.c.l.b16 %v820
        %v1327 = vpack.c.b16 %v1324, %v1323
        %v1328 = vpack.c.b16 %v1326, %v1325
        %v1332 = vsel %vm839, %v1318, 0
        %1334 = vmatpush.bf16.msra.mxu0 0
        %1335 = vmatpush.bf16.msra.mxu0 0
        %1336 = vmatpush.bf16.msra.mxu0 0
        %1337 = vmatpush.bf16.msra.mxu0 0
        %1338 = vmatpush.bf16.msra.mxu0 0
        %1339 = vmatpush.bf16.msra.mxu0 0
        %1340 = vmatpush.bf16.msra.mxu0 %v1328
        %1341 = vmatpush.bf16.msra.mxu0 %v1327
        %1342 = vmatmul.bf16.gmra.mxu0 %v1332
        %v1343 = vpop.f32.mrf.mxu0
        %v1344 = vadd.f32 %v821, %v1343
        %v1345 = vpop.f32.mrf.mxu0
        %1346 = vdwg.mxu0
        %v1347 = vmax.f32 %v1344, 0.0
        %v1348 = vpack.c.bf16 %v1347, %v1347
        %v1353 = vunpack.c.l.b16 %v822
        %v1354 = vunpack.c.l.b16 %v823
        %v1355 = vunpack.c.l.b16 %v824
        %v1356 = vunpack.c.l.b16 %v825
        %v1357 = vpack.c.b16 %v1354, %v1353
        %v1358 = vpack.c.b16 %v1356, %v1355
        %v1362 = vsel %vm839, %v1348, 0
        %1364 = vmatpush.bf16.msra.mxu0 0
        %1365 = vmatpush.bf16.msra.mxu0 0
        %1366 = vmatpush.bf16.msra.mxu0 0
        %1367 = vmatpush.bf16.msra.mxu0 0
        %1368 = vmatpush.bf16.msra.mxu0 0
        %1369 = vmatpush.bf16.msra.mxu0 0
        %1370 = vmatpush.bf16.msra.mxu0 %v1358
        %1371 = vmatpush.bf16.msra.mxu0 %v1357
        %1372 = vmatmul.bf16.gmra.mxu0 %v1362
        %v1373 = vpop.f32.mrf.mxu0
        %v1374 = vadd.f32 %v826, %v1373
        %v1375 = vpop.f32.mrf.mxu0
        %1376 = vdwg.mxu0
        %v1377 = vlaneseq
        %v1378 = vand.u32 %v1377, 127
        %vm1379 = vcmp.lt.s32.totalorder %v1378, 3
        %v1380 = vsel %vm1379, %v1374, -1e+30
        %vm1381 = vcmask 1040384
        %v1382 = vsel %vm1381, %v1380, -inf
        %1383 = vmax.xlane.f32.xlu0 %v1382
        %v1384 = vpop.xlane.xlu0 %1383
        %v1385 = vsub.f32 %v1380, %v1384
        %v1386 = vmul.f32 %v1385, 1.442695
        %v1387 = vpow.pop %v1386
        %v1388 = vsel %vm1381, %v1387, 0.0
        %1389 = vadd.xlane.f32.xlu0 %v1388
        %v1390 = vpop.xlane.xlu0 %1389
        %v1391 = vlog2.pop %v1390
        %v1392 = vmul.f32 %v1391, 0.6931472
        %v1393 = vadd.f32 %v1392, %v1384
        %v1394 = vsub.f32 %v1374, %v1393
        %1395 = vst [vmem:[%s778] sm:$0x1] %v1394
        %s1396 = sand.u32 %s438, 1
        %s1397 = scalar_lea.sflag [#allocation4], %s1396
        %s1398 = sand.u32 %s438, 1
        %s1399 = scalar_lea.vmem [#allocation20], %s1398
        // Predicated region
        $region137: #{tpu_custom_call.1} parent=91 // pred_check
          %p1400 = pneg %p448
        $region138: #{tpu_custom_call.1} parent=91 // pred_check_branch
          %1402 = sbr.rel (%p1400) target = $region140
        $region139: #{tpu_custom_call.1} parent=91 // pred_region
          %1404 = vsyncadd %s1397, 0
          %s1405 = scalar_lea.hbm %s18, %s42
          %s1407 = sshll.u32 %s1399, 4
          %s1408 = int_to_ptr.vmem [resolvable:$true] %s1407
          %s1409 = sshll.u32 %s1405, 4
          %s1410 = int_to_ptr.hbm [resolvable:$true] %s1409
          %1412 = dma.vmem_to_hbm [thread:$0]  %s1408, 16, %s1410, %s1397
        $region140: #{tpu_custom_call.1} parent=91 // pred_fallthru
          _
      $region92: #{tpu_custom_call.1} parent=5 // pred_fallthru
        _
      %p1413 = scmp.le.s32.totalorder 2, %s37
      // Predicated region
      $region141: #{tpu_custom_call.1} parent=5 // pred_check
        %p1414 = pneg %p1413
      $region142: #{tpu_custom_call.1} parent=5 // pred_check_branch
        %1416 = sbr.rel (%p1414) target = $region144
      $region143: #{tpu_custom_call.1} parent=5 // pred_region
        %s1417 = ssub.s32 %s37, 2
        // Predicated region
        $region145: #{tpu_custom_call.1} parent=143 // pred_check
          %p1418 = pneg %p454
        $region146: #{tpu_custom_call.1} parent=143 // pred_check_branch
          %1420 = sbr.rel (%p1418) target = $region148
        $region147: #{tpu_custom_call.1} parent=143 // pred_region
          %s1421 = sand.u32 %s439, 1
          %s1422 = scalar_lea.sflag [#allocation4], %s1421
          %s1423 = sand.u32 %s439, 1
          %s1424 = scalar_lea.vmem [#allocation20], %s1423
          %1426 = dma.done %s1422, 16
        $region148: #{tpu_custom_call.1} parent=143 // pred_fallthru
          _
      $region144: #{tpu_custom_call.1} parent=5 // pred_fallthru
        _
    $region6: #{tpu_custom_call.1} parent=1 // loop_footer
      %s41 = sadd.s32 1, %s37
    $region7: #{tpu_custom_call.1} parent=1 // loop_footer_branch
      %36 = sbr.rel target = $region3
    $region8: #{tpu_custom_call.1} parent=1 // loop_exit
      _
    %1427 = vsyncpa [#allocation3], 1
    %s1428 = scalar_lea.sflag [#allocation3], 1
    %1429 = vsyncpa %s1428, 1
    %1430 = vsyncpa [#allocation6], 1
    %s1431 = scalar_lea.sflag [#allocation6], 1
    %1432 = vsyncpa %s1431, 1
    %1433 = vsyncpa [#allocation9], 1
    %1434 = vsyncpa [#allocation12], 1
    %1435 = vsyncpa [#allocation15], 1
    %1436 = vsyncpa [#allocation18], 1
    %1437 = vsyncpa [#allocation4], 1
    %s1438 = scalar_lea.sflag [#allocation4], 1
    %1439 = vsyncpa %s1438, 1

</llo_original>
